<compile_context>
chip_gen: v7x
topology: tpu7x:2x2x1
jax: 0.10.0
libtpu: 0.0.40
codegen_flags: <defaults>
</compile_context>

<pallas_src>
import functools

import jax
import jax.numpy as jnp
from jax.experimental import pallas as pl
from jax.experimental.pallas import tpu as pltpu


# ---------------------------------------------------------------------------
# Kernel
# ---------------------------------------------------------------------------
def cnn_kernel(x_ref,
               w1_ref, b1_ref, a1_ref,
               w2_ref, b2_ref, a2_ref,
               w3_ref, b3_ref,
               o_ref, *, seq_len):
    """Fused 3x(Conv1d k=3, pad=1)+PReLU stack on a (C, Bt*seq_len) lane slab.

    The lane axis holds Bt examples back-to-back; per-example zero padding is
    reproduced with (pos % seq_len) masks so rolls never cross example edges.
    """
    W = x_ref.shape[-1]                                        # Bt * seq_len

    # Hoisted boundary masks (shared by all three conv layers).
    pos = jax.lax.broadcasted_iota(jnp.int32, (1, W), 1)
    keep_prev = (pos % seq_len != 0).astype(jnp.float32)           # zero first col / example
    keep_next = (pos % seq_len != seq_len - 1).astype(jnp.float32)  # zero last col / example

    def conv(h, w_ref, b_ref):
        # h: (C_in, W).  Build the 3-tap stacked activation and do ONE matmul
        # of contraction depth 3*C_in against w_ref: (C_out, 3*C_in).
        hp = pltpu.roll(h, shift=1, axis=1) * keep_prev            # h[:, l-1]
        hn = pltpu.roll(h, shift=W - 1, axis=1) * keep_next        # h[:, l+1]
        hcat = jnp.concatenate([hp, h, hn], axis=0)                # (3*C_in, W)
        y = jnp.dot(w_ref[...], hcat, preferred_element_type=jnp.float32)
        return y + b_ref[...]                                      # bias (C_out, 1)

    def prelu(h, a_ref):
        a = a_ref[...]                                             # (C, 1)
        return jnp.where(h > 0, h, a * h)

    h = x_ref[...].astype(jnp.float32)                             # (C_in, W)
    h = prelu(conv(h, w1_ref, b1_ref), a1_ref)                     # (nC, W)
    h = prelu(conv(h, w2_ref, b2_ref), a2_ref)                     # (nC, W)
    h = conv(h, w3_ref, b3_ref)                                    # (C_out, W)
    o_ref[...] = h.astype(o_ref.dtype)


# ---------------------------------------------------------------------------
# Wrapper
# ---------------------------------------------------------------------------
def _choose_batch_tile(B, L, target_lanes=4096):
    """Largest divisor of B with Bt*L <= target_lanes, keeping >=2 grid steps
    when B >= 2 (so v7x megacore has work on both TCs)."""
    best = 1
    for bt in range(1, B + 1):
        if B % bt != 0 or bt * L > target_lanes:
            continue
        if B >= 2 and B // bt < 2:
            continue
        best = bt
    return best


def cnn_forward(x, params, *, batch_tile=None):
    """x: (B, in_chan, L) float32, PyTorch Conv1d layout. Returns (B, out_chan, L)."""
    B, C_in, L = x.shape
    nC = params["w1"].shape[0]
    C_out = params["w3"].shape[0]

    Bt = batch_tile if batch_tile is not None else _choose_batch_tile(B, L)
    assert B % Bt == 0, f"batch tile {Bt} must divide batch {B}"
    grid_b = B // Bt
    Wl = Bt * L                                                   # lanes per grid step

    # Layout plumbing (wrapper-side, not compute): fold batch onto the lane axis.
    x_folded = jnp.transpose(x, (1, 0, 2)).reshape(C_in, B * L)   # (C_in, B*L)

    # Stacked-tap weights: (C_out, C_in, 3) -> (C_out, 3*C_in), order must match
    # the in-kernel concat [shift_prev, center, shift_next].
    def stack_taps(w):
        return jnp.concatenate([w[:, :, 0], w[:, :, 1], w[:, :, 2]], axis=1)

    w1 = stack_taps(params["w1"])                                 # (nC, 3*C_in)
    w2 = stack_taps(params["w2"])                                 # (nC, 3*nC)
    w3 = stack_taps(params["w3"])                                 # (C_out, 3*nC)
    b1 = params["b1"].reshape(nC, 1)
    b2 = params["b2"].reshape(nC, 1)
    b3 = params["b3"].reshape(C_out, 1)
    a1 = params["a1"].reshape(nC, 1)
    a2 = params["a2"].reshape(nC, 1)

    # Full-array blocks with constant index maps -> DMA'd once, VMEM-resident.
    def full2d(arr):
        return pl.BlockSpec(arr.shape, lambda i: (0, 0))

    kernel = functools.partial(cnn_kernel, seq_len=L)

    out_folded = pl.pallas_call(
        kernel,
        out_shape=jax.ShapeDtypeStruct((C_out, B * L), jnp.float32),
        grid=(grid_b,),
        in_specs=[
            pl.BlockSpec((C_in, Wl), lambda i: (0, i)),           # x slab: Bt examples
            full2d(w1), full2d(b1), full2d(a1),
            full2d(w2), full2d(b2), full2d(a2),
            full2d(w3), full2d(b3),
        ],
        out_specs=pl.BlockSpec((C_out, Wl), lambda i: (0, i)),    # lane-dense store
        compiler_params=pltpu.CompilerParams(
            dimension_semantics=("parallel",),    # shard batch tiles over TCs (v7x)
            vmem_limit_bytes=32 * 1024 * 1024,    # safe on v5e/v6e/v7x (64 MiB phys on v7x)
        ),
    )(x_folded, w1, b1, a1, w2, b2, a2, w3, b3)

    return jnp.transpose(out_folded.reshape(C_out, B, L), (1, 0, 2))


# ---------------------------------------------------------------------------
# Parameter init (mirrors PyTorch defaults) and plain-JAX reference
# ---------------------------------------------------------------------------
def init_cnn_params(key, n_channels=32, in_chan=2, out_chan=2, prelu_init=0.025):
    """PyTorch-layout params for the default depth=3 stack."""
    params = {}
    layer_dims = [(in_chan, n_channels), (n_channels, n_channels), (n_channels, out_chan)]
    for i, (ci, co) in enumerate(layer_dims, start=1):
        key, kw, kb = jax.random.split(key, 3)
        bound = 1.0 / (ci * 3) ** 0.5
        params[f"w{i}"] = jax.random.uniform(
            kw, (co, ci, 3), jnp.float32, minval=-bound, maxval=bound)
        params[f"b{i}"] = jax.random.uniform(
            kb, (co,), jnp.float32, minval=-bound, maxval=bound)
    params["a1"] = jnp.full((n_channels,), prelu_init, jnp.float32)
    params["a2"] = jnp.full((n_channels,), prelu_init, jnp.float32)
    return params


def cnn_reference(x, params):
    """Independent plain-JAX reference (lax.conv_general_dilated)."""
    def conv(h, w, b):
        y = jax.lax.conv_general_dilated(
            h, w, window_strides=(1,), padding=((1, 1),),
            dimension_numbers=("NCH", "OIH", "NCH"))
        return y + b[None, :, None]

    def prelu(h, a):
        return jnp.where(h > 0, h, a[None, :, None] * h)

    h = prelu(conv(x, params["w1"], params["b1"]), params["a1"])
    h = prelu(conv(h, params["w2"], params["b2"]), params["a2"])
    h = conv(h, params["w3"], params["b3"])
    return h


# ---------------------------------------------------------------------------
if __name__ == "__main__":
    key = jax.random.PRNGKey(0)
    key, kx = jax.random.split(key)

    # Module defaults: depth=3, n_channels=32, in_chan=2, out_chan=2.
    B, in_chan, out_chan, n_channels, L = 8, 2, 2, 32, 128

    x = jax.random.normal(kx, (B, in_chan, L), jnp.float32)
    params = init_cnn_params(key, n_channels=n_channels,
                             in_chan=in_chan, out_chan=out_chan)

    out = jax.block_until_ready(cnn_forward(x, params))
    ref = cnn_reference(x, params)

    assert out.shape == (B, out_chan, L)
    max_err = float(jnp.max(jnp.abs(out - ref)))
    assert jnp.allclose(out, ref, atol=1e-4, rtol=1e-4), f"max_err={max_err}"

    print("KERNEL_OK")
</pallas_src>

<mosaic_0001>
module attributes {stable_mosaic.version = 11 : i64} {
  func.func @cnn_kernel(%arg0: i32, %arg1: memref<2x512xf32, #tpu.memory_space<vmem>>, %arg2: memref<32x6xf32, #tpu.memory_space<vmem>>, %arg3: memref<32x1xf32, #tpu.memory_space<vmem>>, %arg4: memref<32x1xf32, #tpu.memory_space<vmem>>, %arg5: memref<32x96xf32, #tpu.memory_space<vmem>>, %arg6: memref<32x1xf32, #tpu.memory_space<vmem>>, %arg7: memref<32x1xf32, #tpu.memory_space<vmem>>, %arg8: memref<2x96xf32, #tpu.memory_space<vmem>>, %arg9: memref<2x1xf32, #tpu.memory_space<vmem>>, %arg10: memref<2x512xf32, #tpu.memory_space<vmem>>) attributes {dimension_semantics = [#tpu.dimension_semantics<parallel>], iteration_bounds = array<i64: 2>, scalar_prefetch = 0 : i64, scratch_operands = 0 : i64, tpu.core_type = #tpu.core_type<tc>, window_params = [{transform_indices = @transform_0, window_bounds = array<i64: 2, 512>}, {pipeline_mode = #tpu.pipeline_mode<synchronous>, transform_indices = @transform_1, window_bounds = array<i64: 32, 6>}, {pipeline_mode = #tpu.pipeline_mode<synchronous>, transform_indices = @transform_2, window_bounds = array<i64: 32, 1>}, {pipeline_mode = #tpu.pipeline_mode<synchronous>, transform_indices = @transform_3, window_bounds = array<i64: 32, 1>}, {pipeline_mode = #tpu.pipeline_mode<synchronous>, transform_indices = @transform_4, window_bounds = array<i64: 32, 96>}, {pipeline_mode = #tpu.pipeline_mode<synchronous>, transform_indices = @transform_5, window_bounds = array<i64: 32, 1>}, {pipeline_mode = #tpu.pipeline_mode<synchronous>, transform_indices = @transform_6, window_bounds = array<i64: 32, 1>}, {pipeline_mode = #tpu.pipeline_mode<synchronous>, transform_indices = @transform_7, window_bounds = array<i64: 2, 96>}, {pipeline_mode = #tpu.pipeline_mode<synchronous>, transform_indices = @transform_8, window_bounds = array<i64: 2, 1>}, {transform_indices = @transform_9, window_bounds = array<i64: 2, 512>}]} {
    %0 = tpu.iota {dimensions = array<i32: 1>} : vector<1x512xi32>
    %c128_i32 = arith.constant 128 : i32
    %c0_i32 = arith.constant 0 : i32
    %1 = arith.cmpi eq, %c128_i32, %c0_i32 : i32
    %c1_i32 = arith.constant 1 : i32
    %2 = arith.select %1, %c1_i32, %c128_i32 : i32
    %3 = vector.broadcast %2 : i32 to vector<1x512xi32>
    %4 = arith.remsi %0, %3 : vector<1x512xi32>
    %c0_i32_0 = arith.constant 0 : i32
    %5 = vector.broadcast %c0_i32_0 : i32 to vector<1x512xi32>
    %6 = arith.cmpi ne, %4, %5 : vector<1x512xi32>
    %c0_i32_1 = arith.constant 0 : i32
    %7 = vector.broadcast %c0_i32_1 : i32 to vector<1x512xi32>
    %8 = arith.cmpi slt, %4, %7 : vector<1x512xi32>
    %c0_i32_2 = arith.constant 0 : i32
    %9 = arith.cmpi slt, %2, %c0_i32_2 : i32
    %10 = vector.broadcast %9 : i1 to vector<1x512xi1>
    %11 = vector.broadcast %10 : vector<1x512xi1> to vector<1x512xi1>
    %12 = arith.xori %8, %11 : vector<1x512xi1>
    %13 = arith.andi %12, %6 : vector<1x512xi1>
    %14 = vector.broadcast %2 : i32 to vector<1x512xi32>
    %15 = arith.addi %4, %14 : vector<1x512xi32>
    %16 = arith.select %13, %15, %4 : vector<1x512xi1>, vector<1x512xi32>
    %c0_i32_3 = arith.constant 0 : i32
    %17 = vector.broadcast %c0_i32_3 : i32 to vector<1x512xi32>
    %18 = arith.cmpi ne, %16, %17 : vector<1x512xi32>
    %19 = arith.extui %18 : vector<1x512xi1> to vector<1x512xi32>
    %20 = arith.sitofp %19 : vector<1x512xi32> to vector<1x512xf32>
    %c128_i32_4 = arith.constant 128 : i32
    %c0_i32_5 = arith.constant 0 : i32
    %21 = arith.cmpi eq, %c128_i32_4, %c0_i32_5 : i32
    %c1_i32_6 = arith.constant 1 : i32
    %22 = arith.select %21, %c1_i32_6, %c128_i32_4 : i32
    %23 = vector.broadcast %22 : i32 to vector<1x512xi32>
    %24 = arith.remsi %0, %23 : vector<1x512xi32>
    %c0_i32_7 = arith.constant 0 : i32
    %25 = vector.broadcast %c0_i32_7 : i32 to vector<1x512xi32>
    %26 = arith.cmpi ne, %24, %25 : vector<1x512xi32>
    %c0_i32_8 = arith.constant 0 : i32
    %27 = vector.broadcast %c0_i32_8 : i32 to vector<1x512xi32>
    %28 = arith.cmpi slt, %24, %27 : vector<1x512xi32>
    %c0_i32_9 = arith.constant 0 : i32
    %29 = arith.cmpi slt, %22, %c0_i32_9 : i32
    %30 = vector.broadcast %29 : i1 to vector<1x512xi1>
    %31 = vector.broadcast %30 : vector<1x512xi1> to vector<1x512xi1>
    %32 = arith.xori %28, %31 : vector<1x512xi1>
    %33 = arith.andi %32, %26 : vector<1x512xi1>
    %34 = vector.broadcast %22 : i32 to vector<1x512xi32>
    %35 = arith.addi %24, %34 : vector<1x512xi32>
    %36 = arith.select %33, %35, %24 : vector<1x512xi1>, vector<1x512xi32>
    %c127_i32 = arith.constant 127 : i32
    %37 = vector.broadcast %c127_i32 : i32 to vector<1x512xi32>
    %38 = arith.cmpi ne, %36, %37 : vector<1x512xi32>
    %39 = arith.extui %38 : vector<1x512xi1> to vector<1x512xi32>
    %40 = arith.sitofp %39 : vector<1x512xi32> to vector<1x512xf32>
    %c0 = arith.constant 0 : index
    %c0_10 = arith.constant 0 : index
    %41 = vector.load %arg1[%c0, %c0_10] : memref<2x512xf32, #tpu.memory_space<vmem>>, vector<2x512xf32>
    %c1_i32_11 = arith.constant 1 : i32
    %42 = tpu.dynamic_rotate %41 by %c1_i32_11 dim 1 : vector<2x512xf32>, i32 -> vector<2x512xf32>
    %43 = vector.broadcast %20 : vector<1x512xf32> to vector<2x512xf32>
    %44 = arith.mulf %42, %43 : vector<2x512xf32>
    %c511_i32 = arith.constant 511 : i32
    %45 = tpu.dynamic_rotate %41 by %c511_i32 dim 1 : vector<2x512xf32>, i32 -> vector<2x512xf32>
    %46 = vector.broadcast %40 : vector<1x512xf32> to vector<2x512xf32>
    %47 = arith.mulf %45, %46 : vector<2x512xf32>
    %48 = tpu.concatenate %44, %41, %47 in 0 : vector<2x512xf32>, vector<2x512xf32>, vector<2x512xf32> -> vector<6x512xf32>
    %c0_12 = arith.constant 0 : index
    %c0_13 = arith.constant 0 : index
    %49 = vector.load %arg2[%c0_12, %c0_13] : memref<32x6xf32, #tpu.memory_space<vmem>>, vector<32x6xf32>
    %cst = arith.constant dense<0.000000e+00> : vector<32x512xf32>
    %50 = tpu.matmul %49, %48, %cst {dimension_numbers = #tpu.dot_dimension_numbers<[1], [0], [0], [1], [0, 0, 1, 1], [], []>} : vector<32x6xf32>, vector<6x512xf32>, vector<32x512xf32> -> vector<32x512xf32>
    %c0_14 = arith.constant 0 : index
    %c0_15 = arith.constant 0 : index
    %51 = vector.load %arg3[%c0_14, %c0_15] : memref<32x1xf32, #tpu.memory_space<vmem>>, vector<32x1xf32>
    %52 = vector.broadcast %51 : vector<32x1xf32> to vector<32x512xf32>
    %53 = arith.addf %50, %52 : vector<32x512xf32>
    %c0_16 = arith.constant 0 : index
    %c0_17 = arith.constant 0 : index
    %54 = vector.load %arg4[%c0_16, %c0_17] : memref<32x1xf32, #tpu.memory_space<vmem>>, vector<32x1xf32>
    %cst_18 = arith.constant 0.000000e+00 : f32
    %55 = vector.broadcast %cst_18 : f32 to vector<32x512xf32>
    %56 = arith.cmpf ogt, %53, %55 : vector<32x512xf32>
    %57 = vector.broadcast %54 : vector<32x1xf32> to vector<32x512xf32>
    %58 = arith.mulf %57, %53 : vector<32x512xf32>
    %59 = arith.select %56, %53, %58 : vector<32x512xi1>, vector<32x512xf32>
    %c1_i32_19 = arith.constant 1 : i32
    %60 = tpu.dynamic_rotate %59 by %c1_i32_19 dim 1 : vector<32x512xf32>, i32 -> vector<32x512xf32>
    %61 = vector.broadcast %20 : vector<1x512xf32> to vector<32x512xf32>
    %62 = arith.mulf %60, %61 : vector<32x512xf32>
    %c511_i32_20 = arith.constant 511 : i32
    %63 = tpu.dynamic_rotate %59 by %c511_i32_20 dim 1 : vector<32x512xf32>, i32 -> vector<32x512xf32>
    %64 = vector.broadcast %40 : vector<1x512xf32> to vector<32x512xf32>
    %65 = arith.mulf %63, %64 : vector<32x512xf32>
    %66 = tpu.concatenate %62, %59, %65 in 0 : vector<32x512xf32>, vector<32x512xf32>, vector<32x512xf32> -> vector<96x512xf32>
    %c0_21 = arith.constant 0 : index
    %c0_22 = arith.constant 0 : index
    %67 = vector.load %arg5[%c0_21, %c0_22] : memref<32x96xf32, #tpu.memory_space<vmem>>, vector<32x96xf32>
    %cst_23 = arith.constant dense<0.000000e+00> : vector<32x512xf32>
    %68 = tpu.matmul %67, %66, %cst_23 {dimension_numbers = #tpu.dot_dimension_numbers<[1], [0], [0], [1], [0, 0, 1, 1], [], []>} : vector<32x96xf32>, vector<96x512xf32>, vector<32x512xf32> -> vector<32x512xf32>
    %c0_24 = arith.constant 0 : index
    %c0_25 = arith.constant 0 : index
    %69 = vector.load %arg6[%c0_24, %c0_25] : memref<32x1xf32, #tpu.memory_space<vmem>>, vector<32x1xf32>
    %70 = vector.broadcast %69 : vector<32x1xf32> to vector<32x512xf32>
    %71 = arith.addf %68, %70 : vector<32x512xf32>
    %c0_26 = arith.constant 0 : index
    %c0_27 = arith.constant 0 : index
    %72 = vector.load %arg7[%c0_26, %c0_27] : memref<32x1xf32, #tpu.memory_space<vmem>>, vector<32x1xf32>
    %cst_28 = arith.constant 0.000000e+00 : f32
    %73 = vector.broadcast %cst_28 : f32 to vector<32x512xf32>
    %74 = arith.cmpf ogt, %71, %73 : vector<32x512xf32>
    %75 = vector.broadcast %72 : vector<32x1xf32> to vector<32x512xf32>
    %76 = arith.mulf %75, %71 : vector<32x512xf32>
    %77 = arith.select %74, %71, %76 : vector<32x512xi1>, vector<32x512xf32>
    %c1_i32_29 = arith.constant 1 : i32
    %78 = tpu.dynamic_rotate %77 by %c1_i32_29 dim 1 : vector<32x512xf32>, i32 -> vector<32x512xf32>
    %79 = vector.broadcast %20 : vector<1x512xf32> to vector<32x512xf32>
    %80 = arith.mulf %78, %79 : vector<32x512xf32>
    %c511_i32_30 = arith.constant 511 : i32
    %81 = tpu.dynamic_rotate %77 by %c511_i32_30 dim 1 : vector<32x512xf32>, i32 -> vector<32x512xf32>
    %82 = vector.broadcast %40 : vector<1x512xf32> to vector<32x512xf32>
    %83 = arith.mulf %81, %82 : vector<32x512xf32>
    %84 = tpu.concatenate %80, %77, %83 in 0 : vector<32x512xf32>, vector<32x512xf32>, vector<32x512xf32> -> vector<96x512xf32>
    %c0_31 = arith.constant 0 : index
    %c0_32 = arith.constant 0 : index
    %85 = vector.load %arg8[%c0_31, %c0_32] : memref<2x96xf32, #tpu.memory_space<vmem>>, vector<2x96xf32>
    %cst_33 = arith.constant dense<0.000000e+00> : vector<2x512xf32>
    %86 = tpu.matmul %85, %84, %cst_33 {dimension_numbers = #tpu.dot_dimension_numbers<[1], [0], [0], [1], [0, 0, 1, 1], [], []>} : vector<2x96xf32>, vector<96x512xf32>, vector<2x512xf32> -> vector<2x512xf32>
    %c0_34 = arith.constant 0 : index
    %c0_35 = arith.constant 0 : index
    %87 = vector.load %arg9[%c0_34, %c0_35] : memref<2x1xf32, #tpu.memory_space<vmem>>, vector<2x1xf32>
    %88 = vector.broadcast %87 : vector<2x1xf32> to vector<2x512xf32>
    %89 = arith.addf %86, %88 : vector<2x512xf32>
    %c0_36 = arith.constant 0 : index
    %c0_37 = arith.constant 0 : index
    %90 = vector.load %arg10[%c0_36, %c0_37] : memref<2x512xf32, #tpu.memory_space<vmem>>, vector<2x512xf32>
    tpu.vector_store %arg10[%c0_36, %c0_37], %89 {strides = array<i32>} : memref<2x512xf32, #tpu.memory_space<vmem>>, vector<2x512xf32>,
    return
  }
  func.func @transform_0(%arg0: i32) -> (i32, i32) {
    %c0_i32 = arith.constant 0 : i32
    %c0_i32_0 = arith.constant 0 : i32
    return %c0_i32, %arg0 : i32, i32
  }
  func.func @transform_1(%arg0: i32) -> (i32, i32) {
    %c0_i32 = arith.constant 0 : i32
    %c0_i32_0 = arith.constant 0 : i32
    %c0_i32_1 = arith.constant 0 : i32
    return %c0_i32, %c0_i32_0 : i32, i32
  }
  func.func @transform_2(%arg0: i32) -> (i32, i32) {
    %c0_i32 = arith.constant 0 : i32
    %c0_i32_0 = arith.constant 0 : i32
    %c0_i32_1 = arith.constant 0 : i32
    return %c0_i32, %c0_i32_0 : i32, i32
  }
  func.func @transform_3(%arg0: i32) -> (i32, i32) {
    %c0_i32 = arith.constant 0 : i32
    %c0_i32_0 = arith.constant 0 : i32
    %c0_i32_1 = arith.constant 0 : i32
    return %c0_i32, %c0_i32_0 : i32, i32
  }
  func.func @transform_4(%arg0: i32) -> (i32, i32) {
    %c0_i32 = arith.constant 0 : i32
    %c0_i32_0 = arith.constant 0 : i32
    %c0_i32_1 = arith.constant 0 : i32
    return %c0_i32, %c0_i32_0 : i32, i32
  }
  func.func @transform_5(%arg0: i32) -> (i32, i32) {
    %c0_i32 = arith.constant 0 : i32
    %c0_i32_0 = arith.constant 0 : i32
    %c0_i32_1 = arith.constant 0 : i32
    return %c0_i32, %c0_i32_0 : i32, i32
  }
  func.func @transform_6(%arg0: i32) -> (i32, i32) {
    %c0_i32 = arith.constant 0 : i32
    %c0_i32_0 = arith.constant 0 : i32
    %c0_i32_1 = arith.constant 0 : i32
    return %c0_i32, %c0_i32_0 : i32, i32
  }
  func.func @transform_7(%arg0: i32) -> (i32, i32) {
    %c0_i32 = arith.constant 0 : i32
    %c0_i32_0 = arith.constant 0 : i32
    %c0_i32_1 = arith.constant 0 : i32
    return %c0_i32, %c0_i32_0 : i32, i32
  }
  func.func @transform_8(%arg0: i32) -> (i32, i32) {
    %c0_i32 = arith.constant 0 : i32
    %c0_i32_0 = arith.constant 0 : i32
    %c0_i32_1 = arith.constant 0 : i32
    return %c0_i32, %c0_i32_0 : i32, i32
  }
  func.func @transform_9(%arg0: i32) -> (i32, i32) {
    %c0_i32 = arith.constant 0 : i32
    %c0_i32_0 = arith.constant 0 : i32
    return %c0_i32, %arg0 : i32, i32
  }
}

</mosaic_0001>

<llo_original>
// kernel: tpu_custom_call.1
$region0: #{tpu_custom_call.1}
  #allocation0 [shape = 'u32[]', space=smem, size = 0x4, offset = 0x4, fixed_abs, tag = 'smem constant byte address 0x4 - core index']
  #allocation1 [shape = 'u32[144,128]{1,0:T(1,128)}', space=vmem, size = 0x12000, scoped, tag = 'internal scratch']
  %s0 = inlined_call_operand.vmem [shape: f32[2,1024], index: 0, kind: input, shape index: {}]
  %s1 = inlined_call_operand.vmem [shape: f32[32,6], index: 1, kind: input, shape index: {}]
  %s2 = inlined_call_operand.vmem [shape: f32[32,1], index: 2, kind: input, shape index: {}]
  %s3 = inlined_call_operand.vmem [shape: f32[32,1], index: 3, kind: input, shape index: {}]
  %s4 = inlined_call_operand.vmem [shape: f32[32,96], index: 4, kind: input, shape index: {}]
  %s5 = inlined_call_operand.vmem [shape: f32[32,1], index: 5, kind: input, shape index: {}]
  %s6 = inlined_call_operand.vmem [shape: f32[32,1], index: 6, kind: input, shape index: {}]
  %s7 = inlined_call_operand.vmem [shape: f32[2,96], index: 7, kind: input, shape index: {}]
  %s8 = inlined_call_operand.vmem [shape: f32[2,1], index: 8, kind: input, shape index: {}]
  %s9 = inlined_call_operand.hbm [shape: f32[2,1024], index: 9, kind: output, shape index: {}]
  %s10 = sld [smem:[#allocation0]]
  $region69: #{tpu_custom_call.1} parent=0
    _
  %s12 = ssub.s32 1, %s10
  %s13 = scalar_select 0, %s12, %s10
  $region1: #{tpu_custom_call.1} parent=0
    #allocation2 [shape = 'u8[8192]{0}', space=vmem, size = 0x2000, scoped, tag = 'output window, operand 0']
    #allocation3 [shape = 's32[2]{0}', space=sflag, size = 0x8, scoped, tag = 'scoped memory for tpu_custom_call.1']
    %14 = vsyncpa [#allocation3], 0
    %s15 = scalar_lea.sflag [#allocation3], 1
    %16 = vsyncpa %s15, 0
    loop: start=0, step=1, limit=4
    $region2: #{tpu_custom_call.1} parent=1 // loop_pre_header
      _
    $region3: #{tpu_custom_call.1} parent=1 // loop_header
      %s18 = sphi 0, %s22
      %p19 = scmp.ge.s32.totalorder %s18, 4
      %s28 = sphi 0, %s30
      %s31 = sphi 0, %s28
      %s32 = sphi 0, %s31
      %s48 = sphi 0, %s32
      %s52 = sphi 0, %s52
      %s54 = sphi 0, %s52
      %s55 = sphi 0, %s54
      %s69 = sphi 0, %s55
      %s73 = sphi 0, %s73
      %s75 = sphi 0, %s73
      %s76 = sphi 0, %s75
      %s90 = sphi 0, %s76
      %s94 = sphi 0, %s94
      %s96 = sphi 0, %s94
      %s97 = sphi 0, %s96
      %s111 = sphi 0, %s97
      %s115 = sphi 0, %s115
      %s117 = sphi 0, %s115
      %s118 = sphi 0, %s117
      %s132 = sphi 0, %s118
      %s136 = sphi 0, %s136
      %s138 = sphi 0, %s136
      %s139 = sphi 0, %s138
      %s153 = sphi 0, %s139
      %s157 = sphi 0, %s157
      %s159 = sphi 0, %s157
      %s160 = sphi 0, %s159
      %s174 = sphi 0, %s160
      %s178 = sphi 0, %s178
      %s180 = sphi 0, %s178
      %s181 = sphi 0, %s180
      %s195 = sphi 0, %s181
      %s199 = sphi 0, %s199
      %s201 = sphi 0, %s199
      %s202 = sphi 0, %s201
      %s216 = sphi 0, %s202
      %s222 = sphi 0, %s224
      %s225 = sphi 0, %s222
      %s226 = sphi 0, %s225
      %s242 = sphi 0, %s226
    $region4: #{tpu_custom_call.1} parent=1 // loop_header_branch
      %21 = sbr.rel (%p19) target = $region8
    $region5: #{tpu_custom_call.1} parent=1 // loop_body
      %s23 = ssub.s32 %s18, 1
      %s24 = ssub.s32 %s18, 2
      %s25 = sadd.s32 %s18, 1
      %s26 = ssub.s32 %s18, %s25
      %p27 = scmp.eq.s32.totalorder %s26, 0
      %s29 = sadd.s32 %s28, 1
      %s30 = scalar_select %p27, %s28, %s29
      %p33 = pneg %p27
      %p34 = scmp.eq.s32.totalorder %s18, 1
      %p35 = por %p33, %p34
      %p36 = scmp.ne.s32.totalorder %s28, %s31
      %p37 = scmp.eq.s32.totalorder %s18, 0
      %p38 = por %p36, %p37
      %p39 = scmp.ne.s32.totalorder %s28, %s31
      %p40 = scmp.eq.s32.totalorder %s23, 1
      %p41 = por %p39, %p40
      %p42 = scmp.ne.s32.totalorder %s31, %s32
      %p43 = scmp.eq.s32.totalorder %s23, 0
      %p44 = por %p42, %p43
      %p45 = scmp.ne.s32.totalorder %s31, %s32
      %p46 = scmp.eq.s32.totalorder %s24, 1
      %p47 = por %p45, %p46
      %p49 = scmp.ne.s32.totalorder %s32, %s48
      %p50 = scmp.eq.s32.totalorder %s24, 0
      %p51 = por %p49, %p50
      %s53 = sadd.s32 %s52, 1
      %p56 = scmp.eq.s32.totalorder %s18, 1
      %p57 = scmp.ne.s32.totalorder %s52, %s54
      %p58 = scmp.eq.s32.totalorder %s18, 0
      %p59 = por %p57, %p58
      %p60 = scmp.ne.s32.totalorder %s52, %s54
      %p61 = scmp.eq.s32.totalorder %s23, 1
      %p62 = por %p60, %p61
      %p63 = scmp.ne.s32.totalorder %s54, %s55
      %p64 = scmp.eq.s32.totalorder %s23, 0
      %p65 = por %p63, %p64
      %p66 = scmp.ne.s32.totalorder %s54, %s55
      %p67 = scmp.eq.s32.totalorder %s24, 1
      %p68 = por %p66, %p67
      %p70 = scmp.ne.s32.totalorder %s55, %s69
      %p71 = scmp.eq.s32.totalorder %s24, 0
      %p72 = por %p70, %p71
      %s74 = sadd.s32 %s73, 1
      %p77 = scmp.eq.s32.totalorder %s18, 1
      %p78 = scmp.ne.s32.totalorder %s73, %s75
      %p79 = scmp.eq.s32.totalorder %s18, 0
      %p80 = por %p78, %p79
      %p81 = scmp.ne.s32.totalorder %s73, %s75
      %p82 = scmp.eq.s32.totalorder %s23, 1
      %p83 = por %p81, %p82
      %p84 = scmp.ne.s32.totalorder %s75, %s76
      %p85 = scmp.eq.s32.totalorder %s23, 0
      %p86 = por %p84, %p85
      %p87 = scmp.ne.s32.totalorder %s75, %s76
      %p88 = scmp.eq.s32.totalorder %s24, 1
      %p89 = por %p87, %p88
      %p91 = scmp.ne.s32.totalorder %s76, %s90
      %p92 = scmp.eq.s32.totalorder %s24, 0
      %p93 = por %p91, %p92
      %s95 = sadd.s32 %s94, 1
      %p98 = scmp.eq.s32.totalorder %s18, 1
      %p99 = scmp.ne.s32.totalorder %s94, %s96
      %p100 = scmp.eq.s32.totalorder %s18, 0
      %p101 = por %p99, %p100
      %p102 = scmp.ne.s32.totalorder %s94, %s96
      %p103 = scmp.eq.s32.totalorder %s23, 1
      %p104 = por %p102, %p103
      %p105 = scmp.ne.s32.totalorder %s96, %s97
      %p106 = scmp.eq.s32.totalorder %s23, 0
      %p107 = por %p105, %p106
      %p108 = scmp.ne.s32.totalorder %s96, %s97
      %p109 = scmp.eq.s32.totalorder %s24, 1
      %p110 = por %p108, %p109
      %p112 = scmp.ne.s32.totalorder %s97, %s111
      %p113 = scmp.eq.s32.totalorder %s24, 0
      %p114 = por %p112, %p113
      %s116 = sadd.s32 %s115, 1
      %p119 = scmp.eq.s32.totalorder %s18, 1
      %p120 = scmp.ne.s32.totalorder %s115, %s117
      %p121 = scmp.eq.s32.totalorder %s18, 0
      %p122 = por %p120, %p121
      %p123 = scmp.ne.s32.totalorder %s115, %s117
      %p124 = scmp.eq.s32.totalorder %s23, 1
      %p125 = por %p123, %p124
      %p126 = scmp.ne.s32.totalorder %s117, %s118
      %p127 = scmp.eq.s32.totalorder %s23, 0
      %p128 = por %p126, %p127
      %p129 = scmp.ne.s32.totalorder %s117, %s118
      %p130 = scmp.eq.s32.totalorder %s24, 1
      %p131 = por %p129, %p130
      %p133 = scmp.ne.s32.totalorder %s118, %s132
      %p134 = scmp.eq.s32.totalorder %s24, 0
      %p135 = por %p133, %p134
      %s137 = sadd.s32 %s136, 1
      %p140 = scmp.eq.s32.totalorder %s18, 1
      %p141 = scmp.ne.s32.totalorder %s136, %s138
      %p142 = scmp.eq.s32.totalorder %s18, 0
      %p143 = por %p141, %p142
      %p144 = scmp.ne.s32.totalorder %s136, %s138
      %p145 = scmp.eq.s32.totalorder %s23, 1
      %p146 = por %p144, %p145
      %p147 = scmp.ne.s32.totalorder %s138, %s139
      %p148 = scmp.eq.s32.totalorder %s23, 0
      %p149 = por %p147, %p148
      %p150 = scmp.ne.s32.totalorder %s138, %s139
      %p151 = scmp.eq.s32.totalorder %s24, 1
      %p152 = por %p150, %p151
      %p154 = scmp.ne.s32.totalorder %s139, %s153
      %p155 = scmp.eq.s32.totalorder %s24, 0
      %p156 = por %p154, %p155
      %s158 = sadd.s32 %s157, 1
      %p161 = scmp.eq.s32.totalorder %s18, 1
      %p162 = scmp.ne.s32.totalorder %s157, %s159
      %p163 = scmp.eq.s32.totalorder %s18, 0
      %p164 = por %p162, %p163
      %p165 = scmp.ne.s32.totalorder %s157, %s159
      %p166 = scmp.eq.s32.totalorder %s23, 1
      %p167 = por %p165, %p166
      %p168 = scmp.ne.s32.totalorder %s159, %s160
      %p169 = scmp.eq.s32.totalorder %s23, 0
      %p170 = por %p168, %p169
      %p171 = scmp.ne.s32.totalorder %s159, %s160
      %p172 = scmp.eq.s32.totalorder %s24, 1
      %p173 = por %p171, %p172
      %p175 = scmp.ne.s32.totalorder %s160, %s174
      %p176 = scmp.eq.s32.totalorder %s24, 0
      %p177 = por %p175, %p176
      %s179 = sadd.s32 %s178, 1
      %p182 = scmp.eq.s32.totalorder %s18, 1
      %p183 = scmp.ne.s32.totalorder %s178, %s180
      %p184 = scmp.eq.s32.totalorder %s18, 0
      %p185 = por %p183, %p184
      %p186 = scmp.ne.s32.totalorder %s178, %s180
      %p187 = scmp.eq.s32.totalorder %s23, 1
      %p188 = por %p186, %p187
      %p189 = scmp.ne.s32.totalorder %s180, %s181
      %p190 = scmp.eq.s32.totalorder %s23, 0
      %p191 = por %p189, %p190
      %p192 = scmp.ne.s32.totalorder %s180, %s181
      %p193 = scmp.eq.s32.totalorder %s24, 1
      %p194 = por %p192, %p193
      %p196 = scmp.ne.s32.totalorder %s181, %s195
      %p197 = scmp.eq.s32.totalorder %s24, 0
      %p198 = por %p196, %p197
      %s200 = sadd.s32 %s199, 1
      %p203 = scmp.eq.s32.totalorder %s18, 1
      %p204 = scmp.ne.s32.totalorder %s199, %s201
      %p205 = scmp.eq.s32.totalorder %s18, 0
      %p206 = por %p204, %p205
      %p207 = scmp.ne.s32.totalorder %s199, %s201
      %p208 = scmp.eq.s32.totalorder %s23, 1
      %p209 = por %p207, %p208
      %p210 = scmp.ne.s32.totalorder %s201, %s202
      %p211 = scmp.eq.s32.totalorder %s23, 0
      %p212 = por %p210, %p211
      %p213 = scmp.ne.s32.totalorder %s201, %s202
      %p214 = scmp.eq.s32.totalorder %s24, 1
      %p215 = por %p213, %p214
      %p217 = scmp.ne.s32.totalorder %s202, %s216
      %p218 = scmp.eq.s32.totalorder %s24, 0
      %p219 = por %p217, %p218
      %s220 = ssub.s32 %s18, %s25
      %p221 = scmp.eq.s32.totalorder %s220, 0
      %s223 = sadd.s32 %s222, 1
      %s224 = scalar_select %p221, %s222, %s223
      %p227 = pneg %p221
      %p228 = scmp.eq.s32.totalorder %s18, 1
      %p229 = por %p227, %p228
      %p230 = scmp.ne.s32.totalorder %s222, %s225
      %p231 = scmp.eq.s32.totalorder %s18, 0
      %p232 = por %p230, %p231
      %p233 = scmp.ne.s32.totalorder %s222, %s225
      %p234 = scmp.eq.s32.totalorder %s23, 1
      %p235 = por %p233, %p234
      %p236 = scmp.ne.s32.totalorder %s225, %s226
      %p237 = scmp.eq.s32.totalorder %s23, 0
      %p238 = por %p236, %p237
      %p239 = scmp.ne.s32.totalorder %s225, %s226
      %p240 = scmp.eq.s32.totalorder %s24, 1
      %p241 = por %p239, %p240
      %p243 = scmp.ne.s32.totalorder %s226, %s242
      %p244 = scmp.eq.s32.totalorder %s24, 0
      %p245 = por %p243, %p244
      %p246 = scmp.le.s32.totalorder 1, %s18
      %p247 = scmp.lt.s32.totalorder %s18, 3
      %p248 = pnand %p246, %p247
      %p249 = pneg %p248
      // Predicated region
      $region9: #{tpu_custom_call.1} parent=5 // pred_check
        _
      $region10: #{tpu_custom_call.1} parent=5 // pred_check_branch
        %251 = sbr.rel (%p248) target = $region12
      $region11: #{tpu_custom_call.1} parent=5 // pred_region
        %s252 = ssub.s32 %s18, 1
        // Predicated region
        $region13: #{tpu_custom_call.1} parent=11 // pred_check
          %p253 = pneg %p65
        $region14: #{tpu_custom_call.1} parent=11 // pred_check_branch
          %255 = sbr.rel (%p253) target = $region16
        $region15: #{tpu_custom_call.1} parent=11 // pred_region
          _
        $region16: #{tpu_custom_call.1} parent=11 // pred_fallthru
          _
        // Predicated region
        $region17: #{tpu_custom_call.1} parent=11 // pred_check
          %p256 = pneg %p86
        $region18: #{tpu_custom_call.1} parent=11 // pred_check_branch
          %258 = sbr.rel (%p256) target = $region20
        $region19: #{tpu_custom_call.1} parent=11 // pred_region
          _
        $region20: #{tpu_custom_call.1} parent=11 // pred_fallthru
          _
        // Predicated region
        $region21: #{tpu_custom_call.1} parent=11 // pred_check
          %p259 = pneg %p107
        $region22: #{tpu_custom_call.1} parent=11 // pred_check_branch
          %261 = sbr.rel (%p259) target = $region24
        $region23: #{tpu_custom_call.1} parent=11 // pred_region
          _
        $region24: #{tpu_custom_call.1} parent=11 // pred_fallthru
          _
        // Predicated region
        $region25: #{tpu_custom_call.1} parent=11 // pred_check
          %p262 = pneg %p128
        $region26: #{tpu_custom_call.1} parent=11 // pred_check_branch
          %264 = sbr.rel (%p262) target = $region28
        $region27: #{tpu_custom_call.1} parent=11 // pred_region
          _
        $region28: #{tpu_custom_call.1} parent=11 // pred_fallthru
          _
        // Predicated region
        $region29: #{tpu_custom_call.1} parent=11 // pred_check
          %p265 = pneg %p149
        $region30: #{tpu_custom_call.1} parent=11 // pred_check_branch
          %267 = sbr.rel (%p265) target = $region32
        $region31: #{tpu_custom_call.1} parent=11 // pred_region
          _
        $region32: #{tpu_custom_call.1} parent=11 // pred_fallthru
          _
        // Predicated region
        $region33: #{tpu_custom_call.1} parent=11 // pred_check
          %p268 = pneg %p170
        $region34: #{tpu_custom_call.1} parent=11 // pred_check_branch
          %270 = sbr.rel (%p268) target = $region36
        $region35: #{tpu_custom_call.1} parent=11 // pred_region
          _
        $region36: #{tpu_custom_call.1} parent=11 // pred_fallthru
          _
        // Predicated region
        $region37: #{tpu_custom_call.1} parent=11 // pred_check
          %p271 = pneg %p191
        $region38: #{tpu_custom_call.1} parent=11 // pred_check_branch
          %273 = sbr.rel (%p271) target = $region40
        $region39: #{tpu_custom_call.1} parent=11 // pred_region
          _
        $region40: #{tpu_custom_call.1} parent=11 // pred_fallthru
          _
        // Predicated region
        $region41: #{tpu_custom_call.1} parent=11 // pred_check
          %p274 = pneg %p212
        $region42: #{tpu_custom_call.1} parent=11 // pred_check_branch
          %276 = sbr.rel (%p274) target = $region44
        $region43: #{tpu_custom_call.1} parent=11 // pred_region
          _
        $region44: #{tpu_custom_call.1} parent=11 // pred_fallthru
          _
      $region12: #{tpu_custom_call.1} parent=5 // pred_fallthru
        _
      %p277 = scmp.lt.s32.totalorder %s18, 2
      // Predicated region
      $region45: #{tpu_custom_call.1} parent=5 // pred_check
        %p278 = pneg %p277
      $region46: #{tpu_custom_call.1} parent=5 // pred_check_branch
        %280 = sbr.rel (%p278) target = $region48
      $region47: #{tpu_custom_call.1} parent=5 // pred_region
        // Predicated region
        $region49: #{tpu_custom_call.1} parent=47 // pred_check
          %p281 = pneg %p38
        $region50: #{tpu_custom_call.1} parent=47 // pred_check_branch
          %283 = sbr.rel (%p281) target = $region52
        $region51: #{tpu_custom_call.1} parent=47 // pred_region
          %s284 = smul.u32 4, %s18
          %p285 = scmp.lt.s32.totalorder %s284, 7
          %s286 = scalar_select %p285, %s284, 7
          %s287 = smul.addr %s286, 2
          %s288 = scalar_lea.vmem %s0, %s287
          %s289 = smul.u32 4, %s18
        $region52: #{tpu_custom_call.1} parent=47 // pred_fallthru
          _
      $region48: #{tpu_custom_call.1} parent=5 // pred_fallthru
        _
      %p290 = scmp.le.s32.totalorder 1, %s18
      %p291 = scmp.lt.s32.totalorder %s18, 3
      %p292 = pnand %p290, %p291
      %p293 = pneg %p292
      // Predicated region
      $region53: #{tpu_custom_call.1} parent=5 // pred_check
        _
      $region54: #{tpu_custom_call.1} parent=5 // pred_check_branch
        %295 = sbr.rel (%p292) target = $region56
      $region55: #{tpu_custom_call.1} parent=5 // pred_region
        %s296 = ssub.s32 %s18, 1
        %s297 = smul.u32 4, %s23
        %p298 = scmp.lt.s32.totalorder %s297, 7
        %s299 = scalar_select %p298, %s297, 7
        %s300 = smul.addr %s299, 2
        %s301 = scalar_lea.vmem %s0, %s300
        %p302 = pneg %p44
        %p303 = pneg %p41
        %p304 = pneg %p65
        %p305 = pneg %p62
        %p306 = pneg %p86
        %p307 = pneg %p83
        %p308 = pneg %p107
        %p309 = pneg %p104
        %p310 = pneg %p128
        %p311 = pneg %p125
        %p312 = pneg %p149
        %p313 = pneg %p146
        %p314 = pneg %p170
        %p315 = pneg %p167
        %p316 = pneg %p191
        %p317 = pneg %p188
        %p318 = pneg %p212
        %p319 = pneg %p209
        %p320 = pneg %p238
        %p321 = pneg %p235
        %s322 = sand.u32 %s225, 1
        %s323 = scalar_lea.sflag [#allocation3], %s322
        %s324 = sand.u32 %s225, 1
        %s325 = smul.addr %s324, 8
        %s326 = scalar_lea.vmem [#allocation2], %s325
        %s327 = smul.u32 4, %s23
        %p328 = scmp.lt.s32.totalorder %s327, 7
        %s329 = scalar_select %p328, %s327, 7
        %s330 = smul.addr %s329, 2
        %s331 = scalar_lea.vmem %s0, %s330
        %s332 = smul.u32 4, %s23
        %s333 = smul.u32 4, %s23
        %v334 = vlaneseq
        %v335 = vand.u32 %v334, 127
        %v336 = vadd.s32 %v335, 128
        %v337 = vadd.s32 %v335, 256
        %v338 = vadd.s32 %v335, 384
        %vm339 = vcmp.lt.s32.totalorder %v335, 0
        %v340 = vsub.s32 0, %v335
        %v341 = vsel %vm339, %v340, %v335
        %v342 = vshrl.u32 %v341, 7
        %v343 = vand.u32 %v341, 127
        %v344 = vsub.s32 0, %v343
        %v345 = vsel %vm339, %v344, %v343
        %vm346 = vcmp.lt.s32.totalorder %v336, 0
        %v347 = vsub.s32 0, %v336
        %v348 = vsel %vm346, %v347, %v336
        %v349 = vshrl.u32 %v348, 7
        %v350 = vand.u32 %v348, 127
        %v351 = vsub.s32 0, %v350
        %v352 = vsel %vm346, %v351, %v350
        %vm353 = vcmp.lt.s32.totalorder %v337, 0
        %v354 = vsub.s32 0, %v337
        %v355 = vsel %vm353, %v354, %v337
        %v356 = vshrl.u32 %v355, 7
        %v357 = vand.u32 %v355, 127
        %v358 = vsub.s32 0, %v357
        %v359 = vsel %vm353, %v358, %v357
        %vm360 = vcmp.lt.s32.totalorder %v338, 0
        %v361 = vsub.s32 0, %v338
        %v362 = vsel %vm360, %v361, %v338
        %v363 = vshrl.u32 %v362, 7
        %v364 = vand.u32 %v362, 127
        %v365 = vsub.s32 0, %v364
        %v366 = vsel %vm360, %v365, %v364
        %vm367 = vcmp.ne.s32.totalorder %v345, 0
        %vm368 = vcmp.ne.s32.totalorder %v352, 0
        %vm369 = vcmp.ne.s32.totalorder %v359, 0
        %vm370 = vcmp.ne.s32.totalorder %v366, 0
        %vm371 = vcmp.lt.s32.totalorder %v345, 0
        %vm372 = vcmp.lt.s32.totalorder %v352, 0
        %vm373 = vcmp.lt.s32.totalorder %v359, 0
        %vm374 = vcmp.lt.s32.totalorder %v366, 0
        %vm375 = vmand %vm371, %vm367
        %vm376 = vmand %vm372, %vm368
        %vm377 = vmand %vm373, %vm369
        %vm378 = vmand %vm374, %vm370
        %v379 = vadd.s32 %v345, 128
        %v380 = vadd.s32 %v352, 128
        %v381 = vadd.s32 %v359, 128
        %v382 = vadd.s32 %v366, 128
        %v383 = vsel %vm375, %v379, %v345
        %v384 = vsel %vm376, %v380, %v352
        %v385 = vsel %vm377, %v381, %v359
        %v386 = vsel %vm378, %v382, %v366
        %vm387 = vcmp.ne.s32.totalorder %v383, 0
        %vm388 = vcmp.ne.s32.totalorder %v384, 0
        %vm389 = vcmp.ne.s32.totalorder %v385, 0
        %vm390 = vcmp.ne.s32.totalorder %v386, 0
        %v391 = vsel %vm387, 1, 0
        %v392 = vsel %vm388, 1, 0
        %v393 = vsel %vm389, 1, 0
        %v394 = vsel %vm390, 1, 0
        %v395 = vcvt.s32.f32 %v391
        %v396 = vcvt.s32.f32 %v392
        %v397 = vcvt.s32.f32 %v393
        %v398 = vcvt.s32.f32 %v394
        %vm399 = vcmp.ne.s32.totalorder %v383, 127
        %vm400 = vcmp.ne.s32.totalorder %v384, 127
        %vm401 = vcmp.ne.s32.totalorder %v385, 127
        %vm402 = vcmp.ne.s32.totalorder %v386, 127
        %v403 = vsel %vm399, 1, 0
        %v404 = vsel %vm400, 1, 0
        %v405 = vsel %vm401, 1, 0
        %v406 = vsel %vm402, 1, 0
        %v407 = vcvt.s32.f32 %v403
        %v408 = vcvt.s32.f32 %v404
        %v409 = vcvt.s32.f32 %v405
        %v410 = vcvt.s32.f32 %v406
        %v411 = vld [vmem:[%s331] sm:$0xff]
        %v413 = vcombine.high %v411, %v411
        %v415 = vunpack.c.l.s4 1983009808
        %v416 = vunpack.c.0.s8 %v415
        %v417 = vlaneseq
        %v418 = vshrl.u32 %v417, 7
        %v419 = vsub.s32 %v416, %v418
        %v420 = vrot.slane %v411, %v419
        %v422 = vunpack.c.l.s4 1983009808
        %v423 = vunpack.c.0.s8 %v422
        %v424 = vlaneseq
        %v425 = vshrl.u32 %v424, 7
        %v426 = vsub.s32 %v423, %v425
        %v427 = vrot.slane %v413, %v426
        %v428 = vcombine.high %v420, %v420
        %v429 = vcombine.high %v427, %v427
        %434 = vrot.lane.b32.xlu0 %v420, 1
        %v435 = vpop.permute.xlu0 %434
        %436 = vrot.lane.b32.xlu0 %v428, 1
        %v437 = vpop.permute.xlu0 %436
        %438 = vrot.lane.b32.xlu0 %v427, 1
        %v439 = vpop.permute.xlu0 %438
        %440 = vrot.lane.b32.xlu0 %v429, 1
        %v441 = vpop.permute.xlu0 %440
        %vm442 = vcmp.lt.s32.totalorder %v335, 1
        %v443 = vsel %vm442, %v439, %v441
        %v444 = vsel %vm442, %v437, %v439
        %v445 = vsel %vm442, %v435, %v437
        %v446 = vsel %vm442, %v441, %v435
        %v447 = vmul.f32 %v446, %v395
        %v448 = vmul.f32 %v445, %v396
        %v449 = vmul.f32 %v444, %v397
        %v450 = vmul.f32 %v443, %v398
        %451 = vrot.lane.b32.xlu0 %v420, 127
        %v452 = vpop.permute.xlu0 %451
        %453 = vrot.lane.b32.xlu0 %v428, 127
        %v454 = vpop.permute.xlu0 %453
        %455 = vrot.lane.b32.xlu0 %v427, 127
        %v456 = vpop.permute.xlu0 %455
        %457 = vrot.lane.b32.xlu0 %v429, 127
        %v458 = vpop.permute.xlu0 %457
        %vm459 = vcmp.lt.s32.totalorder %v335, 127
        %v460 = vsel %vm459, %v456, %v458
        %v461 = vsel %vm459, %v454, %v456
        %v462 = vsel %vm459, %v452, %v454
        %v463 = vsel %vm459, %v458, %v452
        %v464 = vmul.f32 %v462, %v407
        %v465 = vmul.f32 %v461, %v408
        %v466 = vmul.f32 %v460, %v409
        %v467 = vmul.f32 %v463, %v410
        %v468 = vcombine.low %v411, %v411
        %v470 = vunpack.c.l.s4 1983009808
        %v471 = vunpack.c.0.s8 %v470
        %v472 = vlaneseq
        %v473 = vshrl.u32 %v472, 7
        %v474 = vsub.s32 %v471, %v473
        %v475 = vrot.slane %v468, %v474
        %v476 = vcombine.high %v475, %v475
        %v483 = vrot.slane %v464, 4
        %v484 = vrot.slane %v465, 4
        %v485 = vrot.slane %v466, 4
        %v486 = vrot.slane %v467, 4
        %vm491 = vcmask 1041408
        %v492 = vsel %vm491, %v447, %v475
        %v493 = vsel %vm491, %v448, %v476
        %v494 = vsel %vm491, %v449, %v420
        %v495 = vsel %vm491, %v450, %v428
        %vm496 = vcmask 1043456
        %v497 = vsel %vm496, %v492, %v483
        %v498 = vsel %vm496, %v493, %v484
        %v499 = vsel %vm496, %v494, %v485
        %v500 = vsel %vm496, %v495, %v486
        %v501 = vld [vmem:[%s1] sm:$0xff]
        %v502 = vld [vmem:[%s1 + $0x8] sm:$0xff]
        %v503 = vld [vmem:[%s1 + $0x10] sm:$0xff]
        %v504 = vld [vmem:[%s1 + $0x18] sm:$0xff]
        %v505 = vld [vmem:[%s2] sm:$0xff]
        %v506 = vld [vmem:[%s2 + $0x8] sm:$0xff]
        %v507 = vld [vmem:[%s2 + $0x10] sm:$0xff]
        %v508 = vld [vmem:[%s2 + $0x18] sm:$0xff]
        %510 = vset.pattern.permute.xlu0 0
        %511 = vperm.xlu0 %510, %v505
        %v512 = vpop.permute.xlu0 %511
        %515 = vset.pattern.permute.xlu0 0
        %516 = vperm.xlu0 %515, %v506
        %v517 = vpop.permute.xlu0 %516
        %520 = vset.pattern.permute.xlu0 0
        %521 = vperm.xlu0 %520, %v507
        %v522 = vpop.permute.xlu0 %521
        %525 = vset.pattern.permute.xlu0 0
        %526 = vperm.xlu0 %525, %v508
        %v527 = vpop.permute.xlu0 %526
        %vm529 = vcmask 48128
        %v531 = vsel %vm529, %v501, 0
        %v534 = vsel %vm529, %v502, 0
        %v537 = vsel %vm529, %v503, 0
        %v540 = vsel %vm529, %v504, 0
        %vm542 = vcmask 1045504
        %v544 = vsel %vm542, %v497, 0
        %v547 = vsel %vm542, %v498, 0
        %v550 = vsel %vm542, %v499, 0
        %v553 = vsel %vm542, %v500, 0
        %555 = vmatprep.subr.mxu0 %v547
        %556 = vmatpush1.msra.mxu0 %v544
        %557 = vmatprep.subr.mxu0 0.0
        %558 = vmatpush1.msra.mxu0 0.0
        %559 = vmatprep.subr.mxu0 0.0
        %560 = vmatpush1.msra.mxu0 0.0
        %561 = vmatprep.subr.mxu0 0.0
        %562 = vmatpush1.msra.mxu0 0.0
        %563 = vmatprep.subr.mxu0 0.0
        %564 = vmatpush1.msra.mxu0 0.0
        %565 = vmatprep.subr.mxu0 0.0
        %566 = vmatpush1.msra.mxu0 0.0
        %567 = vmatprep.subr.mxu0 0.0
        %568 = vmatpush1.msra.mxu0 0.0
        %569 = vmatprep.subr.mxu0 0.0
        %570 = vmatpush1.msra.mxu0 0.0
        %571 = vmatprep.subr.mxu0 0.0
        %572 = vmatpush1.msra.mxu0 0.0
        %573 = vmatprep.subr.mxu0 0.0
        %574 = vmatpush1.msra.mxu0 0.0
        %575 = vmatprep.subr.mxu0 0.0
        %576 = vmatpush1.msra.mxu0 0.0
        %577 = vmatprep.subr.mxu0 0.0
        %578 = vmatpush1.msra.mxu0 0.0
        %579 = vmatprep.subr.mxu0 0.0
        %580 = vmatpush1.msra.mxu0 0.0
        %581 = vmatprep.subr.mxu0 0.0
        %582 = vmatpush1.msra.mxu0 0.0
        %583 = vmatprep.subr.mxu0 0.0
        %584 = vmatpush1.msra.mxu0 0.0
        %585 = vmatprep.subr.mxu0 0.0
        %586 = vmatpush1.msra.mxu0 0.0
        %587 = vmatprep.subr.mxu0 0.0
        %588 = vmatpush1.msra.mxu0 0.0
        %589 = vmatprep.subr.mxu0 0.0
        %590 = vmatpush1.msra.mxu0 0.0
        %591 = vmatprep.subr.mxu0 0.0
        %592 = vmatpush1.msra.mxu0 0.0
        %593 = vmatprep.subr.mxu0 0.0
        %594 = vmatpush1.msra.mxu0 0.0
        %595 = vmatprep.subr.mxu0 0.0
        %596 = vmatpush1.msra.mxu0 0.0
        %597 = vmatprep.subr.mxu0 0.0
        %598 = vmatpush1.msra.mxu0 0.0
        %599 = vmatprep.subr.mxu0 0.0
        %600 = vmatpush1.msra.mxu0 0.0
        %601 = vmatprep.subr.mxu0 0.0
        %602 = vmatpush1.msra.mxu0 0.0
        %603 = vmatprep.subr.mxu0 0.0
        %604 = vmatpush1.msra.mxu0 0.0
        %605 = vmatprep.subr.mxu0 0.0
        %606 = vmatpush1.msra.mxu0 0.0
        %607 = vmatprep.subr.mxu0 0.0
        %608 = vmatpush1.msra.mxu0 0.0
        %609 = vmatprep.subr.mxu0 0.0
        %610 = vmatpush1.msra.mxu0 0.0
        %611 = vmatprep.subr.mxu0 0.0
        %612 = vmatpush1.msra.mxu0 0.0
        %613 = vmatprep.subr.mxu0 0.0
        %614 = vmatpush1.msra.mxu0 0.0
        %615 = vmatprep.subr.mxu0 0.0
        %616 = vmatpush1.msra.mxu0 0.0
        %617 = vmatprep.subr.mxu0 0.0
        %618 = vmatpush1.msra.mxu0 0.0
        %619 = vmatprep.mubr.f32.mxu0 0.0
        %620 = vmatmul.mubr.f32.gmra.mrb[0].mxu0 %v531
        %v621 = vpop.f32.mrb[0].mxu0
        %v622 = vadd.f32 %v512, %v621
        %v623 = vpop.f32.mrb[0].mxu0
        %v624 = vadd.f32 %v512, %v623
        %625 = vmatprep.mubr.f32.mxu0 0.0
        %626 = vmatmul.mubr.f32.gmra.mrb[0].mxu0 %v534
        %v627 = vpop.f32.mrb[0].mxu0
        %v628 = vadd.f32 %v517, %v627
        %v629 = vpop.f32.mrb[0].mxu0
        %v630 = vadd.f32 %v517, %v629
        %631 = vmatprep.mubr.f32.mxu0 0.0
        %632 = vmatmul.mubr.f32.gmra.mrb[0].mxu0 %v537
        %v633 = vpop.f32.mrb[0].mxu0
        %v634 = vadd.f32 %v522, %v633
        %v635 = vpop.f32.mrb[0].mxu0
        %v636 = vadd.f32 %v522, %v635
        %637 = vmatprep.mubr.f32.mxu0 0.0
        %638 = vmatmul.mubr.f32.gmra.mrb[0].mxu0 %v540
        %v639 = vpop.f32.mrb[0].mxu0
        %v640 = vadd.f32 %v527, %v639
        %v641 = vpop.f32.mrb[0].mxu0
        %v642 = vadd.f32 %v527, %v641
        %643 = vdwg.mxu0
        %644 = vmatprep.subr.mxu0 %v553
        %645 = vmatpush1.msra.mxu0 %v550
        %646 = vmatprep.subr.mxu0 0.0
        %647 = vmatpush1.msra.mxu0 0.0
        %648 = vmatprep.subr.mxu0 0.0
        %649 = vmatpush1.msra.mxu0 0.0
        %650 = vmatprep.subr.mxu0 0.0
        %651 = vmatpush1.msra.mxu0 0.0
        %652 = vmatprep.subr.mxu0 0.0
        %653 = vmatpush1.msra.mxu0 0.0
        %654 = vmatprep.subr.mxu0 0.0
        %655 = vmatpush1.msra.mxu0 0.0
        %656 = vmatprep.subr.mxu0 0.0
        %657 = vmatpush1.msra.mxu0 0.0
        %658 = vmatprep.subr.mxu0 0.0
        %659 = vmatpush1.msra.mxu0 0.0
        %660 = vmatprep.subr.mxu0 0.0
        %661 = vmatpush1.msra.mxu0 0.0
        %662 = vmatprep.subr.mxu0 0.0
        %663 = vmatpush1.msra.mxu0 0.0
        %664 = vmatprep.subr.mxu0 0.0
        %665 = vmatpush1.msra.mxu0 0.0
        %666 = vmatprep.subr.mxu0 0.0
        %667 = vmatpush1.msra.mxu0 0.0
        %668 = vmatprep.subr.mxu0 0.0
        %669 = vmatpush1.msra.mxu0 0.0
        %670 = vmatprep.subr.mxu0 0.0
        %671 = vmatpush1.msra.mxu0 0.0
        %672 = vmatprep.subr.mxu0 0.0
        %673 = vmatpush1.msra.mxu0 0.0
        %674 = vmatprep.subr.mxu0 0.0
        %675 = vmatpush1.msra.mxu0 0.0
        %676 = vmatprep.subr.mxu0 0.0
        %677 = vmatpush1.msra.mxu0 0.0
        %678 = vmatprep.subr.mxu0 0.0
        %679 = vmatpush1.msra.mxu0 0.0
        %680 = vmatprep.subr.mxu0 0.0
        %681 = vmatpush1.msra.mxu0 0.0
        %682 = vmatprep.subr.mxu0 0.0
        %683 = vmatpush1.msra.mxu0 0.0
        %684 = vmatprep.subr.mxu0 0.0
        %685 = vmatpush1.msra.mxu0 0.0
        %686 = vmatprep.subr.mxu0 0.0
        %687 = vmatpush1.msra.mxu0 0.0
        %688 = vmatprep.subr.mxu0 0.0
        %689 = vmatpush1.msra.mxu0 0.0
        %690 = vmatprep.subr.mxu0 0.0
        %691 = vmatpush1.msra.mxu0 0.0
        %692 = vmatprep.subr.mxu0 0.0
        %693 = vmatpush1.msra.mxu0 0.0
        %694 = vmatprep.subr.mxu0 0.0
        %695 = vmatpush1.msra.mxu0 0.0
        %696 = vmatprep.subr.mxu0 0.0
        %697 = vmatpush1.msra.mxu0 0.0
        %698 = vmatprep.subr.mxu0 0.0
        %699 = vmatpush1.msra.mxu0 0.0
        %700 = vmatprep.subr.mxu0 0.0
        %701 = vmatpush1.msra.mxu0 0.0
        %702 = vmatprep.subr.mxu0 0.0
        %703 = vmatpush1.msra.mxu0 0.0
        %704 = vmatprep.subr.mxu0 0.0
        %705 = vmatpush1.msra.mxu0 0.0
        %706 = vmatprep.subr.mxu0 0.0
        %707 = vmatpush1.msra.mxu0 0.0
        %708 = vmatprep.mubr.f32.mxu0 0.0
        %709 = vmatmul.mubr.f32.gmra.mrb[0].mxu0 %v531
        %v710 = vpop.f32.mrb[0].mxu0
        %v711 = vadd.f32 %v512, %v710
        %v712 = vpop.f32.mrb[0].mxu0
        %v713 = vadd.f32 %v512, %v712
        %714 = vmatprep.mubr.f32.mxu0 0.0
        %715 = vmatmul.mubr.f32.gmra.mrb[0].mxu0 %v534
        %v716 = vpop.f32.mrb[0].mxu0
        %v717 = vadd.f32 %v517, %v716
        %v718 = vpop.f32.mrb[0].mxu0
        %v719 = vadd.f32 %v517, %v718
        %720 = vmatprep.mubr.f32.mxu0 0.0
        %721 = vmatmul.mubr.f32.gmra.mrb[0].mxu0 %v537
        %v722 = vpop.f32.mrb[0].mxu0
        %v723 = vadd.f32 %v522, %v722
        %v724 = vpop.f32.mrb[0].mxu0
        %v725 = vadd.f32 %v522, %v724
        %726 = vmatprep.mubr.f32.mxu0 0.0
        %727 = vmatmul.mubr.f32.gmra.mrb[0].mxu0 %v540
        %v728 = vpop.f32.mrb[0].mxu0
        %v729 = vadd.f32 %v527, %v728
        %v730 = vpop.f32.mrb[0].mxu0
        %v731 = vadd.f32 %v527, %v730
        %732 = vdwg.mxu0
        %v733 = vld [vmem:[%s3] sm:$0xff]
        %v734 = vld [vmem:[%s3 + $0x8] sm:$0xff]
        %v735 = vld [vmem:[%s3 + $0x10] sm:$0xff]
        %v736 = vld [vmem:[%s3 + $0x18] sm:$0xff]
        %vm737 = vcmp.gt.f32.partialorder %v622, 0.0
        %vm738 = vcmp.gt.f32.partialorder %v624, 0.0
        %vm739 = vcmp.gt.f32.partialorder %v711, 0.0
        %vm740 = vcmp.gt.f32.partialorder %v713, 0.0
        %vm741 = vcmp.gt.f32.partialorder %v628, 0.0
        %vm742 = vcmp.gt.f32.partialorder %v630, 0.0
        %vm743 = vcmp.gt.f32.partialorder %v717, 0.0
        %vm744 = vcmp.gt.f32.partialorder %v719, 0.0
        %vm745 = vcmp.gt.f32.partialorder %v634, 0.0
        %vm746 = vcmp.gt.f32.partialorder %v636, 0.0
        %vm747 = vcmp.gt.f32.partialorder %v723, 0.0
        %vm748 = vcmp.gt.f32.partialorder %v725, 0.0
        %vm749 = vcmp.gt.f32.partialorder %v640, 0.0
        %vm750 = vcmp.gt.f32.partialorder %v642, 0.0
        %vm751 = vcmp.gt.f32.partialorder %v729, 0.0
        %vm752 = vcmp.gt.f32.partialorder %v731, 0.0
        %754 = vset.pattern.permute.xlu0 0
        %755 = vperm.xlu0 %754, %v733
        %v756 = vpop.permute.xlu0 %755
        %759 = vset.pattern.permute.xlu0 0
        %760 = vperm.xlu0 %759, %v734
        %v761 = vpop.permute.xlu0 %760
        %764 = vset.pattern.permute.xlu0 0
        %765 = vperm.xlu0 %764, %v735
        %v766 = vpop.permute.xlu0 %765
        %769 = vset.pattern.permute.xlu0 0
        %770 = vperm.xlu0 %769, %v736
        %v771 = vpop.permute.xlu0 %770
        %v773 = vmul.f32 %v756, %v622
        %v774 = vmul.f32 %v756, %v624
        %v775 = vmul.f32 %v756, %v711
        %v776 = vmul.f32 %v756, %v713
        %v777 = vmul.f32 %v761, %v628
        %v778 = vmul.f32 %v761, %v630
        %v779 = vmul.f32 %v761, %v717
        %v780 = vmul.f32 %v761, %v719
        %v781 = vmul.f32 %v766, %v634
        %v782 = vmul.f32 %v766, %v636
        %v783 = vmul.f32 %v766, %v723
        %v784 = vmul.f32 %v766, %v725
        %v785 = vmul.f32 %v771, %v640
        %v786 = vmul.f32 %v771, %v642
        %v787 = vmul.f32 %v771, %v729
        %v788 = vmul.f32 %v771, %v731
        %v789 = vsel %vm737, %v622, %v773
        %v790 = vsel %vm738, %v624, %v774
        %v791 = vsel %vm739, %v711, %v775
        %v792 = vsel %vm740, %v713, %v776
        %v793 = vsel %vm741, %v628, %v777
        %v794 = vsel %vm742, %v630, %v778
        %v795 = vsel %vm743, %v717, %v779
        %v796 = vsel %vm744, %v719, %v780
        %v797 = vsel %vm745, %v634, %v781
        %v798 = vsel %vm746, %v636, %v782
        %v799 = vsel %vm747, %v723, %v783
        %v800 = vsel %vm748, %v725, %v784
        %v801 = vsel %vm749, %v640, %v785
        %v802 = vsel %vm750, %v642, %v786
        %v803 = vsel %vm751, %v729, %v787
        %v804 = vsel %vm752, %v731, %v788
        %805 = vrot.lane.b32.xlu0 %v789, 1
        %v806 = vpop.permute.xlu0 %805
        %807 = vrot.lane.b32.xlu0 %v793, 1
        %v808 = vpop.permute.xlu0 %807
        %809 = vrot.lane.b32.xlu0 %v797, 1
        %v810 = vpop.permute.xlu0 %809
        %811 = vrot.lane.b32.xlu0 %v801, 1
        %v812 = vpop.permute.xlu0 %811
        %813 = vrot.lane.b32.xlu0 %v790, 1
        %v814 = vpop.permute.xlu0 %813
        %815 = vrot.lane.b32.xlu0 %v794, 1
        %v816 = vpop.permute.xlu0 %815
        %817 = vrot.lane.b32.xlu0 %v798, 1
        %v818 = vpop.permute.xlu0 %817
        %819 = vrot.lane.b32.xlu0 %v802, 1
        %v820 = vpop.permute.xlu0 %819
        %821 = vrot.lane.b32.xlu0 %v791, 1
        %v822 = vpop.permute.xlu0 %821
        %823 = vrot.lane.b32.xlu0 %v795, 1
        %v824 = vpop.permute.xlu0 %823
        %825 = vrot.lane.b32.xlu0 %v799, 1
        %v826 = vpop.permute.xlu0 %825
        %827 = vrot.lane.b32.xlu0 %v803, 1
        %v828 = vpop.permute.xlu0 %827
        %829 = vrot.lane.b32.xlu0 %v792, 1
        %v830 = vpop.permute.xlu0 %829
        %831 = vrot.lane.b32.xlu0 %v796, 1
        %v832 = vpop.permute.xlu0 %831
        %833 = vrot.lane.b32.xlu0 %v800, 1
        %v834 = vpop.permute.xlu0 %833
        %835 = vrot.lane.b32.xlu0 %v804, 1
        %v836 = vpop.permute.xlu0 %835
        %v837 = vsel %vm442, %v822, %v830
        %v838 = vsel %vm442, %v824, %v832
        %v839 = vsel %vm442, %v826, %v834
        %v840 = vsel %vm442, %v828, %v836
        %v841 = vsel %vm442, %v814, %v822
        %v842 = vsel %vm442, %v816, %v824
        %v843 = vsel %vm442, %v818, %v826
        %v844 = vsel %vm442, %v820, %v828
        %v845 = vsel %vm442, %v806, %v814
        %v846 = vsel %vm442, %v808, %v816
        %v847 = vsel %vm442, %v810, %v818
        %v848 = vsel %vm442, %v812, %v820
        %v849 = vsel %vm442, %v830, %v806
        %v850 = vsel %vm442, %v832, %v808
        %v851 = vsel %vm442, %v834, %v810
        %v852 = vsel %vm442, %v836, %v812
        %v853 = vmul.f32 %v849, %v395
        %v854 = vmul.f32 %v845, %v396
        %v855 = vmul.f32 %v841, %v397
        %v856 = vmul.f32 %v837, %v398
        %v857 = vmul.f32 %v850, %v395
        %v858 = vmul.f32 %v846, %v396
        %v859 = vmul.f32 %v842, %v397
        %v860 = vmul.f32 %v838, %v398
        %v861 = vmul.f32 %v851, %v395
        %v862 = vmul.f32 %v847, %v396
        %v863 = vmul.f32 %v843, %v397
        %v864 = vmul.f32 %v839, %v398
        %v865 = vmul.f32 %v852, %v395
        %v866 = vmul.f32 %v848, %v396
        %v867 = vmul.f32 %v844, %v397
        %v868 = vmul.f32 %v840, %v398
        %869 = vrot.lane.b32.xlu0 %v789, 127
        %v870 = vpop.permute.xlu0 %869
        %871 = vrot.lane.b32.xlu0 %v793, 127
        %v872 = vpop.permute.xlu0 %871
        %873 = vrot.lane.b32.xlu0 %v797, 127
        %v874 = vpop.permute.xlu0 %873
        %875 = vrot.lane.b32.xlu0 %v801, 127
        %v876 = vpop.permute.xlu0 %875
        %877 = vrot.lane.b32.xlu0 %v790, 127
        %v878 = vpop.permute.xlu0 %877
        %879 = vrot.lane.b32.xlu0 %v794, 127
        %v880 = vpop.permute.xlu0 %879
        %881 = vrot.lane.b32.xlu0 %v798, 127
        %v882 = vpop.permute.xlu0 %881
        %883 = vrot.lane.b32.xlu0 %v802, 127
        %v884 = vpop.permute.xlu0 %883
        %885 = vrot.lane.b32.xlu0 %v791, 127
        %v886 = vpop.permute.xlu0 %885
        %887 = vrot.lane.b32.xlu0 %v795, 127
        %v888 = vpop.permute.xlu0 %887
        %889 = vrot.lane.b32.xlu0 %v799, 127
        %v890 = vpop.permute.xlu0 %889
        %891 = vrot.lane.b32.xlu0 %v803, 127
        %v892 = vpop.permute.xlu0 %891
        %893 = vrot.lane.b32.xlu0 %v792, 127
        %v894 = vpop.permute.xlu0 %893
        %895 = vrot.lane.b32.xlu0 %v796, 127
        %v896 = vpop.permute.xlu0 %895
        %897 = vrot.lane.b32.xlu0 %v800, 127
        %v898 = vpop.permute.xlu0 %897
        %899 = vrot.lane.b32.xlu0 %v804, 127
        %v900 = vpop.permute.xlu0 %899
        %v901 = vsel %vm459, %v886, %v894
        %v902 = vsel %vm459, %v888, %v896
        %v903 = vsel %vm459, %v890, %v898
        %v904 = vsel %vm459, %v892, %v900
        %v905 = vsel %vm459, %v878, %v886
        %v906 = vsel %vm459, %v880, %v888
        %v907 = vsel %vm459, %v882, %v890
        %v908 = vsel %vm459, %v884, %v892
        %v909 = vsel %vm459, %v870, %v878
        %v910 = vsel %vm459, %v872, %v880
        %v911 = vsel %vm459, %v874, %v882
        %v912 = vsel %vm459, %v876, %v884
        %v913 = vsel %vm459, %v894, %v870
        %v914 = vsel %vm459, %v896, %v872
        %v915 = vsel %vm459, %v898, %v874
        %v916 = vsel %vm459, %v900, %v876
        %v917 = vmul.f32 %v909, %v407
        %v918 = vmul.f32 %v905, %v408
        %v919 = vmul.f32 %v901, %v409
        %v920 = vmul.f32 %v913, %v410
        %v921 = vmul.f32 %v910, %v407
        %v922 = vmul.f32 %v906, %v408
        %v923 = vmul.f32 %v902, %v409
        %v924 = vmul.f32 %v914, %v410
        %v925 = vmul.f32 %v911, %v407
        %v926 = vmul.f32 %v907, %v408
        %v927 = vmul.f32 %v903, %v409
        %v928 = vmul.f32 %v915, %v410
        %v929 = vmul.f32 %v912, %v407
        %v930 = vmul.f32 %v908, %v408
        %v931 = vmul.f32 %v904, %v409
        %v932 = vmul.f32 %v916, %v410
        %v933 = vld [vmem:[%s4] sm:$0xff]
        %v934 = vld [vmem:[%s4 + $0x8] sm:$0xff]
        %v935 = vld [vmem:[%s4 + $0x10] sm:$0xff]
        %v936 = vld [vmem:[%s4 + $0x18] sm:$0xff]
        %v937 = vld [vmem:[%s5] sm:$0xff]
        %v938 = vld [vmem:[%s5 + $0x8] sm:$0xff]
        %v939 = vld [vmem:[%s5 + $0x10] sm:$0xff]
        %v940 = vld [vmem:[%s5 + $0x18] sm:$0xff]
        %942 = vset.pattern.permute.xlu0 0
        %943 = vperm.xlu0 %942, %v937
        %v944 = vpop.permute.xlu0 %943
        %947 = vset.pattern.permute.xlu0 0
        %948 = vperm.xlu0 %947, %v938
        %v949 = vpop.permute.xlu0 %948
        %952 = vset.pattern.permute.xlu0 0
        %953 = vperm.xlu0 %952, %v939
        %v954 = vpop.permute.xlu0 %953
        %957 = vset.pattern.permute.xlu0 0
        %958 = vperm.xlu0 %957, %v940
        %v959 = vpop.permute.xlu0 %958
        %vm961 = vcmask 785408
        %v963 = vsel %vm961, %v933, 0
        %v966 = vsel %vm961, %v934, 0
        %v969 = vsel %vm961, %v935, 0
        %v972 = vsel %vm961, %v936, 0
        %974 = vmatprep.subr.mxu0 %v854
        %975 = vmatpush1.msra.mxu0 %v853
        %976 = vmatprep.subr.mxu0 %v858
        %977 = vmatpush1.msra.mxu0 %v857
        %978 = vmatprep.subr.mxu0 %v862
        %979 = vmatpush1.msra.mxu0 %v861
        %980 = vmatprep.subr.mxu0 %v866
        %981 = vmatpush1.msra.mxu0 %v865
        %982 = vmatprep.subr.mxu0 %v790
        %983 = vmatpush1.msra.mxu0 %v789
        %984 = vmatprep.subr.mxu0 %v794
        %985 = vmatpush1.msra.mxu0 %v793
        %986 = vmatprep.subr.mxu0 %v798
        %987 = vmatpush1.msra.mxu0 %v797
        %988 = vmatprep.subr.mxu0 %v802
        %989 = vmatpush1.msra.mxu0 %v801
        %990 = vmatprep.subr.mxu0 %v918
        %991 = vmatpush1.msra.mxu0 %v917
        %992 = vmatprep.subr.mxu0 %v922
        %993 = vmatpush1.msra.mxu0 %v921
        %994 = vmatprep.subr.mxu0 %v926
        %995 = vmatpush1.msra.mxu0 %v925
        %996 = vmatprep.subr.mxu0 %v930
        %997 = vmatpush1.msra.mxu0 %v929
        %998 = vmatprep.subr.mxu0 0.0
        %999 = vmatpush1.msra.mxu0 0.0
        %1000 = vmatprep.subr.mxu0 0.0
        %1001 = vmatpush1.msra.mxu0 0.0
        %1002 = vmatprep.subr.mxu0 0.0
        %1003 = vmatpush1.msra.mxu0 0.0
        %1004 = vmatprep.subr.mxu0 0.0
        %1005 = vmatpush1.msra.mxu0 0.0
        %1006 = vmatprep.subr.mxu0 0.0
        %1007 = vmatpush1.msra.mxu0 0.0
        %1008 = vmatprep.subr.mxu0 0.0
        %1009 = vmatpush1.msra.mxu0 0.0
        %1010 = vmatprep.subr.mxu0 0.0
        %1011 = vmatpush1.msra.mxu0 0.0
        %1012 = vmatprep.subr.mxu0 0.0
        %1013 = vmatpush1.msra.mxu0 0.0
        %1014 = vmatprep.subr.mxu0 0.0
        %1015 = vmatpush1.msra.mxu0 0.0
        %1016 = vmatprep.subr.mxu0 0.0
        %1017 = vmatpush1.msra.mxu0 0.0
        %1018 = vmatprep.subr.mxu0 0.0
        %1019 = vmatpush1.msra.mxu0 0.0
        %1020 = vmatprep.subr.mxu0 0.0
        %1021 = vmatpush1.msra.mxu0 0.0
        %1022 = vmatprep.subr.mxu0 0.0
        %1023 = vmatpush1.msra.mxu0 0.0
        %1024 = vmatprep.subr.mxu0 0.0
        %1025 = vmatpush1.msra.mxu0 0.0
        %1026 = vmatprep.subr.mxu0 0.0
        %1027 = vmatpush1.msra.mxu0 0.0
        %1028 = vmatprep.subr.mxu0 0.0
        %1029 = vmatpush1.msra.mxu0 0.0
        %1030 = vmatprep.subr.mxu0 0.0
        %1031 = vmatpush1.msra.mxu0 0.0
        %1032 = vmatprep.subr.mxu0 0.0
        %1033 = vmatpush1.msra.mxu0 0.0
        %1034 = vmatprep.subr.mxu0 0.0
        %1035 = vmatpush1.msra.mxu0 0.0
        %1036 = vmatprep.subr.mxu0 0.0
        %1037 = vmatpush1.msra.mxu0 0.0
        %1038 = vmatprep.mubr.f32.mxu0 0.0
        %1039 = vmatmul.mubr.f32.gmra.mrb[0].mxu0 %v963
        %v1040 = vpop.f32.mrb[0].mxu0
        %v1041 = vadd.f32 %v944, %v1040
        %v1042 = vpop.f32.mrb[0].mxu0
        %v1043 = vadd.f32 %v944, %v1042
        %1044 = vmatprep.mubr.f32.mxu0 0.0
        %1045 = vmatmul.mubr.f32.gmra.mrb[0].mxu0 %v966
        %v1046 = vpop.f32.mrb[0].mxu0
        %v1047 = vadd.f32 %v949, %v1046
        %v1048 = vpop.f32.mrb[0].mxu0
        %v1049 = vadd.f32 %v949, %v1048
        %1050 = vmatprep.mubr.f32.mxu0 0.0
        %1051 = vmatmul.mubr.f32.gmra.mrb[0].mxu0 %v969
        %v1052 = vpop.f32.mrb[0].mxu0
        %v1053 = vadd.f32 %v954, %v1052
        %v1054 = vpop.f32.mrb[0].mxu0
        %v1055 = vadd.f32 %v954, %v1054
        %1056 = vmatprep.mubr.f32.mxu0 0.0
        %1057 = vmatmul.mubr.f32.gmra.mrb[0].mxu0 %v972
        %v1058 = vpop.f32.mrb[0].mxu0
        %v1059 = vadd.f32 %v959, %v1058
        %v1060 = vpop.f32.mrb[0].mxu0
        %v1061 = vadd.f32 %v959, %v1060
        %1062 = vdwg.mxu0
        %1063 = vmatprep.subr.mxu0 %v856
        %1064 = vmatpush1.msra.mxu0 %v855
        %1065 = vmatprep.subr.mxu0 %v860
        %1066 = vmatpush1.msra.mxu0 %v859
        %1067 = vmatprep.subr.mxu0 %v864
        %1068 = vmatpush1.msra.mxu0 %v863
        %1069 = vmatprep.subr.mxu0 %v868
        %1070 = vmatpush1.msra.mxu0 %v867
        %1071 = vmatprep.subr.mxu0 %v792
        %1072 = vmatpush1.msra.mxu0 %v791
        %1073 = vmatprep.subr.mxu0 %v796
        %1074 = vmatpush1.msra.mxu0 %v795
        %1075 = vmatprep.subr.mxu0 %v800
        %1076 = vmatpush1.msra.mxu0 %v799
        %1077 = vmatprep.subr.mxu0 %v804
        %1078 = vmatpush1.msra.mxu0 %v803
        %1079 = vmatprep.subr.mxu0 %v920
        %1080 = vmatpush1.msra.mxu0 %v919
        %1081 = vmatprep.subr.mxu0 %v924
        %1082 = vmatpush1.msra.mxu0 %v923
        %1083 = vmatprep.subr.mxu0 %v928
        %1084 = vmatpush1.msra.mxu0 %v927
        %1085 = vmatprep.subr.mxu0 %v932
        %1086 = vmatpush1.msra.mxu0 %v931
        %1087 = vmatprep.subr.mxu0 0.0
        %1088 = vmatpush1.msra.mxu0 0.0
        %1089 = vmatprep.subr.mxu0 0.0
        %1090 = vmatpush1.msra.mxu0 0.0
        %1091 = vmatprep.subr.mxu0 0.0
        %1092 = vmatpush1.msra.mxu0 0.0
        %1093 = vmatprep.subr.mxu0 0.0
        %1094 = vmatpush1.msra.mxu0 0.0
        %1095 = vmatprep.subr.mxu0 0.0
        %1096 = vmatpush1.msra.mxu0 0.0
        %1097 = vmatprep.subr.mxu0 0.0
        %1098 = vmatpush1.msra.mxu0 0.0
        %1099 = vmatprep.subr.mxu0 0.0
        %1100 = vmatpush1.msra.mxu0 0.0
        %1101 = vmatprep.subr.mxu0 0.0
        %1102 = vmatpush1.msra.mxu0 0.0
        %1103 = vmatprep.subr.mxu0 0.0
        %1104 = vmatpush1.msra.mxu0 0.0
        %1105 = vmatprep.subr.mxu0 0.0
        %1106 = vmatpush1.msra.mxu0 0.0
        %1107 = vmatprep.subr.mxu0 0.0
        %1108 = vmatpush1.msra.mxu0 0.0
        %1109 = vmatprep.subr.mxu0 0.0
        %1110 = vmatpush1.msra.mxu0 0.0
        %1111 = vmatprep.subr.mxu0 0.0
        %1112 = vmatpush1.msra.mxu0 0.0
        %1113 = vmatprep.subr.mxu0 0.0
        %1114 = vmatpush1.msra.mxu0 0.0
        %1115 = vmatprep.subr.mxu0 0.0
        %1116 = vmatpush1.msra.mxu0 0.0
        %1117 = vmatprep.subr.mxu0 0.0
        %1118 = vmatpush1.msra.mxu0 0.0
        %1119 = vmatprep.subr.mxu0 0.0
        %1120 = vmatpush1.msra.mxu0 0.0
        %1121 = vmatprep.subr.mxu0 0.0
        %1122 = vmatpush1.msra.mxu0 0.0
        %1123 = vmatprep.subr.mxu0 0.0
        %1124 = vmatpush1.msra.mxu0 0.0
        %1125 = vmatprep.subr.mxu0 0.0
        %1126 = vmatpush1.msra.mxu0 0.0
        %1127 = vmatprep.mubr.f32.mxu0 0.0
        %1128 = vmatmul.mubr.f32.gmra.mrb[0].mxu0 %v963
        %v1129 = vpop.f32.mrb[0].mxu0
        %v1130 = vadd.f32 %v944, %v1129
        %v1131 = vpop.f32.mrb[0].mxu0
        %v1132 = vadd.f32 %v944, %v1131
        %1133 = vmatprep.mubr.f32.mxu0 0.0
        %1134 = vmatmul.mubr.f32.gmra.mrb[0].mxu0 %v966
        %v1135 = vpop.f32.mrb[0].mxu0
        %v1136 = vadd.f32 %v949, %v1135
        %v1137 = vpop.f32.mrb[0].mxu0
        %v1138 = vadd.f32 %v949, %v1137
        %1139 = vmatprep.mubr.f32.mxu0 0.0
        %1140 = vmatmul.mubr.f32.gmra.mrb[0].mxu0 %v969
        %v1141 = vpop.f32.mrb[0].mxu0
        %v1142 = vadd.f32 %v954, %v1141
        %v1143 = vpop.f32.mrb[0].mxu0
        %v1144 = vadd.f32 %v954, %v1143
        %1145 = vmatprep.mubr.f32.mxu0 0.0
        %1146 = vmatmul.mubr.f32.gmra.mrb[0].mxu0 %v972
        %v1147 = vpop.f32.mrb[0].mxu0
        %v1148 = vadd.f32 %v959, %v1147
        %v1149 = vpop.f32.mrb[0].mxu0
        %v1150 = vadd.f32 %v959, %v1149
        %1151 = vdwg.mxu0
        %v1152 = vld [vmem:[%s6] sm:$0xff]
        %v1153 = vld [vmem:[%s6 + $0x8] sm:$0xff]
        %v1154 = vld [vmem:[%s6 + $0x10] sm:$0xff]
        %v1155 = vld [vmem:[%s6 + $0x18] sm:$0xff]
        %vm1156 = vcmp.gt.f32.partialorder %v1041, 0.0
        %vm1157 = vcmp.gt.f32.partialorder %v1043, 0.0
        %vm1158 = vcmp.gt.f32.partialorder %v1130, 0.0
        %vm1159 = vcmp.gt.f32.partialorder %v1132, 0.0
        %vm1160 = vcmp.gt.f32.partialorder %v1047, 0.0
        %vm1161 = vcmp.gt.f32.partialorder %v1049, 0.0
        %vm1162 = vcmp.gt.f32.partialorder %v1136, 0.0
        %vm1163 = vcmp.gt.f32.partialorder %v1138, 0.0
        %vm1164 = vcmp.gt.f32.partialorder %v1053, 0.0
        %vm1165 = vcmp.gt.f32.partialorder %v1055, 0.0
        %vm1166 = vcmp.gt.f32.partialorder %v1142, 0.0
        %vm1167 = vcmp.gt.f32.partialorder %v1144, 0.0
        %vm1168 = vcmp.gt.f32.partialorder %v1059, 0.0
        %vm1169 = vcmp.gt.f32.partialorder %v1061, 0.0
        %vm1170 = vcmp.gt.f32.partialorder %v1148, 0.0
        %vm1171 = vcmp.gt.f32.partialorder %v1150, 0.0
        %1173 = vset.pattern.permute.xlu0 0
        %1174 = vperm.xlu0 %1173, %v1152
        %v1175 = vpop.permute.xlu0 %1174
        %1178 = vset.pattern.permute.xlu0 0
        %1179 = vperm.xlu0 %1178, %v1153
        %v1180 = vpop.permute.xlu0 %1179
        %1183 = vset.pattern.permute.xlu0 0
        %1184 = vperm.xlu0 %1183, %v1154
        %v1185 = vpop.permute.xlu0 %1184
        %1188 = vset.pattern.permute.xlu0 0
        %1189 = vperm.xlu0 %1188, %v1155
        %v1190 = vpop.permute.xlu0 %1189
        %v1192 = vmul.f32 %v1175, %v1041
        %v1193 = vmul.f32 %v1175, %v1043
        %v1194 = vmul.f32 %v1175, %v1130
        %v1195 = vmul.f32 %v1175, %v1132
        %v1196 = vmul.f32 %v1180, %v1047
        %v1197 = vmul.f32 %v1180, %v1049
        %v1198 = vmul.f32 %v1180, %v1136
        %v1199 = vmul.f32 %v1180, %v1138
        %v1200 = vmul.f32 %v1185, %v1053
        %v1201 = vmul.f32 %v1185, %v1055
        %v1202 = vmul.f32 %v1185, %v1142
        %v1203 = vmul.f32 %v1185, %v1144
        %v1204 = vmul.f32 %v1190, %v1059
        %v1205 = vmul.f32 %v1190, %v1061
        %v1206 = vmul.f32 %v1190, %v1148
        %v1207 = vmul.f32 %v1190, %v1150
        %v1208 = vsel %vm1156, %v1041, %v1192
        %v1209 = vsel %vm1157, %v1043, %v1193
        %v1210 = vsel %vm1158, %v1130, %v1194
        %v1211 = vsel %vm1159, %v1132, %v1195
        %v1212 = vsel %vm1160, %v1047, %v1196
        %v1213 = vsel %vm1161, %v1049, %v1197
        %v1214 = vsel %vm1162, %v1136, %v1198
        %v1215 = vsel %vm1163, %v1138, %v1199
        %v1216 = vsel %vm1164, %v1053, %v1200
        %v1217 = vsel %vm1165, %v1055, %v1201
        %v1218 = vsel %vm1166, %v1142, %v1202
        %v1219 = vsel %vm1167, %v1144, %v1203
        %v1220 = vsel %vm1168, %v1059, %v1204
        %v1221 = vsel %vm1169, %v1061, %v1205
        %v1222 = vsel %vm1170, %v1148, %v1206
        %v1223 = vsel %vm1171, %v1150, %v1207
        %1224 = vrot.lane.b32.xlu0 %v1208, 1
        %v1225 = vpop.permute.xlu0 %1224
        %1226 = vrot.lane.b32.xlu0 %v1212, 1
        %v1227 = vpop.permute.xlu0 %1226
        %1228 = vrot.lane.b32.xlu0 %v1216, 1
        %v1229 = vpop.permute.xlu0 %1228
        %1230 = vrot.lane.b32.xlu0 %v1220, 1
        %v1231 = vpop.permute.xlu0 %1230
        %1232 = vrot.lane.b32.xlu0 %v1209, 1
        %v1233 = vpop.permute.xlu0 %1232
        %1234 = vrot.lane.b32.xlu0 %v1213, 1
        %v1235 = vpop.permute.xlu0 %1234
        %1236 = vrot.lane.b32.xlu0 %v1217, 1
        %v1237 = vpop.permute.xlu0 %1236
        %1238 = vrot.lane.b32.xlu0 %v1221, 1
        %v1239 = vpop.permute.xlu0 %1238
        %1240 = vrot.lane.b32.xlu0 %v1210, 1
        %v1241 = vpop.permute.xlu0 %1240
        %1242 = vrot.lane.b32.xlu0 %v1214, 1
        %v1243 = vpop.permute.xlu0 %1242
        %1244 = vrot.lane.b32.xlu0 %v1218, 1
        %v1245 = vpop.permute.xlu0 %1244
        %1246 = vrot.lane.b32.xlu0 %v1222, 1
        %v1247 = vpop.permute.xlu0 %1246
        %1248 = vrot.lane.b32.xlu0 %v1211, 1
        %v1249 = vpop.permute.xlu0 %1248
        %1250 = vrot.lane.b32.xlu0 %v1215, 1
        %v1251 = vpop.permute.xlu0 %1250
        %1252 = vrot.lane.b32.xlu0 %v1219, 1
        %v1253 = vpop.permute.xlu0 %1252
        %1254 = vrot.lane.b32.xlu0 %v1223, 1
        %v1255 = vpop.permute.xlu0 %1254
        %v1256 = vsel %vm442, %v1241, %v1249
        %v1257 = vsel %vm442, %v1243, %v1251
        %v1258 = vsel %vm442, %v1245, %v1253
        %v1259 = vsel %vm442, %v1247, %v1255
        %v1260 = vsel %vm442, %v1233, %v1241
        %v1261 = vsel %vm442, %v1235, %v1243
        %v1262 = vsel %vm442, %v1237, %v1245
        %v1263 = vsel %vm442, %v1239, %v1247
        %v1264 = vsel %vm442, %v1225, %v1233
        %v1265 = vsel %vm442, %v1227, %v1235
        %v1266 = vsel %vm442, %v1229, %v1237
        %v1267 = vsel %vm442, %v1231, %v1239
        %v1268 = vsel %vm442, %v1249, %v1225
        %v1269 = vsel %vm442, %v1251, %v1227
        %v1270 = vsel %vm442, %v1253, %v1229
        %v1271 = vsel %vm442, %v1255, %v1231
        %v1272 = vmul.f32 %v1268, %v395
        %v1273 = vmul.f32 %v1264, %v396
        %v1274 = vmul.f32 %v1260, %v397
        %v1275 = vmul.f32 %v1256, %v398
        %v1276 = vmul.f32 %v1269, %v395
        %v1277 = vmul.f32 %v1265, %v396
        %v1278 = vmul.f32 %v1261, %v397
        %v1279 = vmul.f32 %v1257, %v398
        %v1280 = vmul.f32 %v1270, %v395
        %v1281 = vmul.f32 %v1266, %v396
        %v1282 = vmul.f32 %v1262, %v397
        %v1283 = vmul.f32 %v1258, %v398
        %v1284 = vmul.f32 %v1271, %v395
        %v1285 = vmul.f32 %v1267, %v396
        %v1286 = vmul.f32 %v1263, %v397
        %v1287 = vmul.f32 %v1259, %v398
        %1288 = vrot.lane.b32.xlu0 %v1208, 127
        %v1289 = vpop.permute.xlu0 %1288
        %1290 = vrot.lane.b32.xlu0 %v1212, 127
        %v1291 = vpop.permute.xlu0 %1290
        %1292 = vrot.lane.b32.xlu0 %v1216, 127
        %v1293 = vpop.permute.xlu0 %1292
        %1294 = vrot.lane.b32.xlu0 %v1220, 127
        %v1295 = vpop.permute.xlu0 %1294
        %1296 = vrot.lane.b32.xlu0 %v1209, 127
        %v1297 = vpop.permute.xlu0 %1296
        %1298 = vrot.lane.b32.xlu0 %v1213, 127
        %v1299 = vpop.permute.xlu0 %1298
        %1300 = vrot.lane.b32.xlu0 %v1217, 127
        %v1301 = vpop.permute.xlu0 %1300
        %1302 = vrot.lane.b32.xlu0 %v1221, 127
        %v1303 = vpop.permute.xlu0 %1302
        %1304 = vrot.lane.b32.xlu0 %v1210, 127
        %v1305 = vpop.permute.xlu0 %1304
        %1306 = vrot.lane.b32.xlu0 %v1214, 127
        %v1307 = vpop.permute.xlu0 %1306
        %1308 = vrot.lane.b32.xlu0 %v1218, 127
        %v1309 = vpop.permute.xlu0 %1308
        %1310 = vrot.lane.b32.xlu0 %v1222, 127
        %v1311 = vpop.permute.xlu0 %1310
        %1312 = vrot.lane.b32.xlu0 %v1211, 127
        %v1313 = vpop.permute.xlu0 %1312
        %1314 = vrot.lane.b32.xlu0 %v1215, 127
        %v1315 = vpop.permute.xlu0 %1314
        %1316 = vrot.lane.b32.xlu0 %v1219, 127
        %v1317 = vpop.permute.xlu0 %1316
        %1318 = vrot.lane.b32.xlu0 %v1223, 127
        %v1319 = vpop.permute.xlu0 %1318
        %v1320 = vsel %vm459, %v1305, %v1313
        %v1321 = vsel %vm459, %v1307, %v1315
        %v1322 = vsel %vm459, %v1309, %v1317
        %v1323 = vsel %vm459, %v1311, %v1319
        %v1324 = vsel %vm459, %v1297, %v1305
        %v1325 = vsel %vm459, %v1299, %v1307
        %v1326 = vsel %vm459, %v1301, %v1309
        %v1327 = vsel %vm459, %v1303, %v1311
        %v1328 = vsel %vm459, %v1289, %v1297
        %v1329 = vsel %vm459, %v1291, %v1299
        %v1330 = vsel %vm459, %v1293, %v1301
        %v1331 = vsel %vm459, %v1295, %v1303
        %v1332 = vsel %vm459, %v1313, %v1289
        %v1333 = vsel %vm459, %v1315, %v1291
        %v1334 = vsel %vm459, %v1317, %v1293
        %v1335 = vsel %vm459, %v1319, %v1295
        %v1336 = vmul.f32 %v1328, %v407
        %v1337 = vmul.f32 %v1324, %v408
        %v1338 = vmul.f32 %v1320, %v409
        %v1339 = vmul.f32 %v1332, %v410
        %v1340 = vmul.f32 %v1329, %v407
        %v1341 = vmul.f32 %v1325, %v408
        %v1342 = vmul.f32 %v1321, %v409
        %v1343 = vmul.f32 %v1333, %v410
        %v1344 = vmul.f32 %v1330, %v407
        %v1345 = vmul.f32 %v1326, %v408
        %v1346 = vmul.f32 %v1322, %v409
        %v1347 = vmul.f32 %v1334, %v410
        %v1348 = vmul.f32 %v1331, %v407
        %v1349 = vmul.f32 %v1327, %v408
        %v1350 = vmul.f32 %v1323, %v409
        %v1351 = vmul.f32 %v1335, %v410
        %v1352 = vld [vmem:[%s7] sm:$0x3]
        %v1353 = vld [vmem:[%s8] sm:$0x3]
        %1355 = vset.pattern.permute.xlu0 0
        %1356 = vperm.xlu0 %1355, %v1353
        %v1357 = vpop.permute.xlu0 %1356
        %v1360 = vsel %vm961, %v1352, 0
        %1362 = vmatprep.subr.mxu0 %v1273
        %1363 = vmatpush1.msra.mxu0 %v1272
        %1364 = vmatprep.subr.mxu0 %v1277
        %1365 = vmatpush1.msra.mxu0 %v1276
        %1366 = vmatprep.subr.mxu0 %v1281
        %1367 = vmatpush1.msra.mxu0 %v1280
        %1368 = vmatprep.subr.mxu0 %v1285
        %1369 = vmatpush1.msra.mxu0 %v1284
        %1370 = vmatprep.subr.mxu0 %v1209
        %1371 = vmatpush1.msra.mxu0 %v1208
        %1372 = vmatprep.subr.mxu0 %v1213
        %1373 = vmatpush1.msra.mxu0 %v1212
        %1374 = vmatprep.subr.mxu0 %v1217
        %1375 = vmatpush1.msra.mxu0 %v1216
        %1376 = vmatprep.subr.mxu0 %v1221
        %1377 = vmatpush1.msra.mxu0 %v1220
        %1378 = vmatprep.subr.mxu0 %v1337
        %1379 = vmatpush1.msra.mxu0 %v1336
        %1380 = vmatprep.subr.mxu0 %v1341
        %1381 = vmatpush1.msra.mxu0 %v1340
        %1382 = vmatprep.subr.mxu0 %v1345
        %1383 = vmatpush1.msra.mxu0 %v1344
        %1384 = vmatprep.subr.mxu0 %v1349
        %1385 = vmatpush1.msra.mxu0 %v1348
        %1386 = vmatprep.subr.mxu0 0.0
        %1387 = vmatpush1.msra.mxu0 0.0
        %1388 = vmatprep.subr.mxu0 0.0
        %1389 = vmatpush1.msra.mxu0 0.0
        %1390 = vmatprep.subr.mxu0 0.0
        %1391 = vmatpush1.msra.mxu0 0.0
        %1392 = vmatprep.subr.mxu0 0.0
        %1393 = vmatpush1.msra.mxu0 0.0
        %1394 = vmatprep.subr.mxu0 0.0
        %1395 = vmatpush1.msra.mxu0 0.0
        %1396 = vmatprep.subr.mxu0 0.0
        %1397 = vmatpush1.msra.mxu0 0.0
        %1398 = vmatprep.subr.mxu0 0.0
        %1399 = vmatpush1.msra.mxu0 0.0
        %1400 = vmatprep.subr.mxu0 0.0
        %1401 = vmatpush1.msra.mxu0 0.0
        %1402 = vmatprep.subr.mxu0 0.0
        %1403 = vmatpush1.msra.mxu0 0.0
        %1404 = vmatprep.subr.mxu0 0.0
        %1405 = vmatpush1.msra.mxu0 0.0
        %1406 = vmatprep.subr.mxu0 0.0
        %1407 = vmatpush1.msra.mxu0 0.0
        %1408 = vmatprep.subr.mxu0 0.0
        %1409 = vmatpush1.msra.mxu0 0.0
        %1410 = vmatprep.subr.mxu0 0.0
        %1411 = vmatpush1.msra.mxu0 0.0
        %1412 = vmatprep.subr.mxu0 0.0
        %1413 = vmatpush1.msra.mxu0 0.0
        %1414 = vmatprep.subr.mxu0 0.0
        %1415 = vmatpush1.msra.mxu0 0.0
        %1416 = vmatprep.subr.mxu0 0.0
        %1417 = vmatpush1.msra.mxu0 0.0
        %1418 = vmatprep.subr.mxu0 0.0
        %1419 = vmatpush1.msra.mxu0 0.0
        %1420 = vmatprep.subr.mxu0 0.0
        %1421 = vmatpush1.msra.mxu0 0.0
        %1422 = vmatprep.subr.mxu0 0.0
        %1423 = vmatpush1.msra.mxu0 0.0
        %1424 = vmatprep.subr.mxu0 0.0
        %1425 = vmatpush1.msra.mxu0 0.0
        %1426 = vmatprep.mubr.f32.mxu0 0.0
        %1427 = vmatmul.mubr.f32.gmra.mrb[0].mxu0 %v1360
        %v1428 = vpop.f32.mrb[0].mxu0
        %v1429 = vadd.f32 %v1357, %v1428
        %v1430 = vpop.f32.mrb[0].mxu0
        %v1431 = vadd.f32 %v1357, %v1430
        %1432 = vdwg.mxu0
        %1433 = vmatprep.subr.mxu0 %v1275
        %1434 = vmatpush1.msra.mxu0 %v1274
        %1435 = vmatprep.subr.mxu0 %v1279
        %1436 = vmatpush1.msra.mxu0 %v1278
        %1437 = vmatprep.subr.mxu0 %v1283
        %1438 = vmatpush1.msra.mxu0 %v1282
        %1439 = vmatprep.subr.mxu0 %v1287
        %1440 = vmatpush1.msra.mxu0 %v1286
        %1441 = vmatprep.subr.mxu0 %v1211
        %1442 = vmatpush1.msra.mxu0 %v1210
        %1443 = vmatprep.subr.mxu0 %v1215
        %1444 = vmatpush1.msra.mxu0 %v1214
        %1445 = vmatprep.subr.mxu0 %v1219
        %1446 = vmatpush1.msra.mxu0 %v1218
        %1447 = vmatprep.subr.mxu0 %v1223
        %1448 = vmatpush1.msra.mxu0 %v1222
        %1449 = vmatprep.subr.mxu0 %v1339
        %1450 = vmatpush1.msra.mxu0 %v1338
        %1451 = vmatprep.subr.mxu0 %v1343
        %1452 = vmatpush1.msra.mxu0 %v1342
        %1453 = vmatprep.subr.mxu0 %v1347
        %1454 = vmatpush1.msra.mxu0 %v1346
        %1455 = vmatprep.subr.mxu0 %v1351
        %1456 = vmatpush1.msra.mxu0 %v1350
        %1457 = vmatprep.subr.mxu0 0.0
        %1458 = vmatpush1.msra.mxu0 0.0
        %1459 = vmatprep.subr.mxu0 0.0
        %1460 = vmatpush1.msra.mxu0 0.0
        %1461 = vmatprep.subr.mxu0 0.0
        %1462 = vmatpush1.msra.mxu0 0.0
        %1463 = vmatprep.subr.mxu0 0.0
        %1464 = vmatpush1.msra.mxu0 0.0
        %1465 = vmatprep.subr.mxu0 0.0
        %1466 = vmatpush1.msra.mxu0 0.0
        %1467 = vmatprep.subr.mxu0 0.0
        %1468 = vmatpush1.msra.mxu0 0.0
        %1469 = vmatprep.subr.mxu0 0.0
        %1470 = vmatpush1.msra.mxu0 0.0
        %1471 = vmatprep.subr.mxu0 0.0
        %1472 = vmatpush1.msra.mxu0 0.0
        %1473 = vmatprep.subr.mxu0 0.0
        %1474 = vmatpush1.msra.mxu0 0.0
        %1475 = vmatprep.subr.mxu0 0.0
        %1476 = vmatpush1.msra.mxu0 0.0
        %1477 = vmatprep.subr.mxu0 0.0
        %1478 = vmatpush1.msra.mxu0 0.0
        %1479 = vmatprep.subr.mxu0 0.0
        %1480 = vmatpush1.msra.mxu0 0.0
        %1481 = vmatprep.subr.mxu0 0.0
        %1482 = vmatpush1.msra.mxu0 0.0
        %1483 = vmatprep.subr.mxu0 0.0
        %1484 = vmatpush1.msra.mxu0 0.0
        %1485 = vmatprep.subr.mxu0 0.0
        %1486 = vmatpush1.msra.mxu0 0.0
        %1487 = vmatprep.subr.mxu0 0.0
        %1488 = vmatpush1.msra.mxu0 0.0
        %1489 = vmatprep.subr.mxu0 0.0
        %1490 = vmatpush1.msra.mxu0 0.0
        %1491 = vmatprep.subr.mxu0 0.0
        %1492 = vmatpush1.msra.mxu0 0.0
        %1493 = vmatprep.subr.mxu0 0.0
        %1494 = vmatpush1.msra.mxu0 0.0
        %1495 = vmatprep.subr.mxu0 0.0
        %1496 = vmatpush1.msra.mxu0 0.0
        %1497 = vmatprep.mubr.f32.mxu0 0.0
        %1498 = vmatmul.mubr.f32.gmra.mrb[0].mxu0 %v1360
        %v1499 = vpop.f32.mrb[0].mxu0
        %v1500 = vadd.f32 %v1357, %v1499
        %v1501 = vpop.f32.mrb[0].mxu0
        %v1502 = vadd.f32 %v1357, %v1501
        %1503 = vdwg.mxu0
        %v1508 = vcombine.low %v1429, %v1431
        %v1509 = vcombine.low %v1500, %v1502
        %v1511 = vunpack.c.l.s4 1983009808
        %v1512 = vunpack.c.0.s8 %v1511
        %v1513 = vlaneseq
        %v1514 = vshrl.u32 %v1513, 7
        %v1515 = vsub.s32 %v1512, %v1514
        %v1516 = vrot.slane %v1508, %v1515
        %v1518 = vunpack.c.l.s4 1983009808
        %v1519 = vunpack.c.0.s8 %v1518
        %v1520 = vlaneseq
        %v1521 = vshrl.u32 %v1520, 7
        %v1522 = vsub.s32 %v1519, %v1521
        %v1523 = vrot.slane %v1509, %v1522
        %v1524 = vcombine.low %v1516, %v1523
        %1526 = vst [vmem:[%s326] sm:$0xff] %v1524
        %s1527 = sand.u32 %s225, 1
        %s1528 = scalar_lea.sflag [#allocation3], %s1527
        %s1529 = sand.u32 %s225, 1
        %s1530 = smul.addr %s1529, 8
        %s1531 = scalar_lea.vmem [#allocation2], %s1530
        // Predicated region
        $region57: #{tpu_custom_call.1} parent=55 // pred_check
          %p1532 = pneg %p235
        $region58: #{tpu_custom_call.1} parent=55 // pred_check_branch
          %1534 = sbr.rel (%p1532) target = $region60
        $region59: #{tpu_custom_call.1} parent=55 // pred_region
          %s1535 = smul.u32 4, %s23
          %s1537 = ssub.s32 128, 128
          %1538 = vsyncadd %s1528, %s1537
          %s1539 = smul.addr %s1535, 32
          %s1540 = scalar_lea.hbm %s9, %s1539
          %s1542 = sshll.u32 %s1531, 4
          %s1543 = int_to_ptr.vmem [resolvable:$true] %s1542
          %1545 = dma.vmem_to_hbm [thread:$0]  %s1543, 128, %s1540, %s1528
        $region60: #{tpu_custom_call.1} parent=55 // pred_fallthru
          _
      $region56: #{tpu_custom_call.1} parent=5 // pred_fallthru
        _
      %p1546 = scmp.le.s32.totalorder 2, %s18
      // Predicated region
      $region61: #{tpu_custom_call.1} parent=5 // pred_check
        %p1547 = pneg %p1546
      $region62: #{tpu_custom_call.1} parent=5 // pred_check_branch
        %1549 = sbr.rel (%p1547) target = $region64
      $region63: #{tpu_custom_call.1} parent=5 // pred_region
        %s1550 = ssub.s32 %s18, 2
        // Predicated region
        $region65: #{tpu_custom_call.1} parent=63 // pred_check
          %p1551 = pneg %p241
        $region66: #{tpu_custom_call.1} parent=63 // pred_check_branch
          %1553 = sbr.rel (%p1551) target = $region68
        $region67: #{tpu_custom_call.1} parent=63 // pred_region
          %s1554 = sand.u32 %s226, 1
          %s1555 = scalar_lea.sflag [#allocation3], %s1554
          %s1556 = sand.u32 %s226, 1
          %s1557 = smul.addr %s1556, 8
          %s1558 = scalar_lea.vmem [#allocation2], %s1557
          %1559 = dma.done %s1555, 128
        $region68: #{tpu_custom_call.1} parent=63 // pred_fallthru
          _
      $region64: #{tpu_custom_call.1} parent=5 // pred_fallthru
        _
    $region6: #{tpu_custom_call.1} parent=1 // loop_footer
      %s22 = sadd.s32 1, %s18
    $region7: #{tpu_custom_call.1} parent=1 // loop_footer_branch
      %17 = sbr.rel target = $region3
    $region8: #{tpu_custom_call.1} parent=1 // loop_exit
      _
    %1560 = vsyncpa [#allocation3], 1
    %s1561 = scalar_lea.sflag [#allocation3], 1
    %1562 = vsyncpa %s1561, 1

</llo_original>
